<compile_context>
chip_gen: v6e
topology: v6e:2x2x1
jax: 0.10.0
libtpu: 0.0.40
codegen_flags: <defaults>
</compile_context>

<pallas_src>
import functools

import jax
import jax.numpy as jnp
from jax.experimental import pallas as pl
from jax.experimental.pallas import tpu as pltpu


def _misin_resblk_kernel(border_ref, x_ref, w1_ref, zb1_ref, wa1_ref, wb1_ref,
                         bb1_ref, w2_ref, zb2_ref, wa2_ref, wb2_ref, bb2_ref,
                         o_ref, *, W, eps, compute_dtype):
    """Whole MisINResBlk forward for one image (one grid step).

    Refs (all VMEM):
      border (4, HW)  i32  rows: [w==0, w==W-1, h==0, h==H-1] reflect masks
      x      (C, HW)  cd   image slab
      w1/w2  (9, C, C) cd  conv3x3 taps, index kh*3+kw, each (out, in)
      zb1/zb2 (C1, 1) f32  per-image fold of Wa[:, C:] @ z + ba
      wa1/wa2 (C1, C) cd   Wa[:, :C]  (acts on the conv/IN output channels)
      wb1/wb2 (C, C1) cd   second 1x1 conv weight
      bb1/bb2 (C, 1)  f32  second 1x1 conv bias
      o      (C, HW)       output slab
    """
    cd = compute_dtype
    C, hw = x_ref.shape

    # Reflect-border masks, broadcast once to full (C, HW) so every select is a
    # plain same-shape jnp.where (no i1 broadcasts inside the tap loop).
    b = border_ref[...]
    w_first = jnp.broadcast_to(b[0:1, :], (C, hw)) != 0
    w_last = jnp.broadcast_to(b[1:2, :], (C, hw)) != 0
    h_first = jnp.broadcast_to(b[2:3, :], (C, hw)) != 0
    h_last = jnp.broadcast_to(b[3:4, :], (C, hw)) != 0

    def shifted(a, s):
        # out[..., m] = a[..., m + s]; wrapped lanes are fixed by reflect masks.
        return pltpu.roll(a, (-s) % hw, axis=1)

    def conv3x3_reflect(xi, w_taps_ref):
        """ReflectionPad2d(1) + 3x3/stride-1 conv on a flattened f32 slab.

        xi: (C_in, HW) f32.  Returns (C_out, HW) f32 (MXU accumulates in f32;
        operands fed in compute_dtype).
        """
        xp1, xm1 = shifted(xi, 1), shifted(xi, -1)
        cols = (jnp.where(w_first, xp1, xm1),   # w' = reflect(w-1)
                xi,                             # w' = w
                jnp.where(w_last, xm1, xp1))    # w' = reflect(w+1)
        acc = None
        for kw in range(3):
            c = cols[kw]
            cp, cm = shifted(c, W), shifted(c, -W)     # rows h+1 / h-1
            rows = (jnp.where(h_first, cp, cm),        # h' = reflect(h-1)
                    c,                                 # h' = h
                    jnp.where(h_last, cm, cp))         # h' = reflect(h+1)
            for kh in range(3):
                wk = w_taps_ref[kh * 3 + kw]           # (C_out, C_in)
                t = jnp.dot(wk, rows[kh].astype(cd),
                            preferred_element_type=jnp.float32)
                acc = t if acc is None else acc + t
        return acc

    def inorm(y):
        # InstanceNorm2d(affine=False), biased variance over H*W, f32.  Kept
        # two-pass (mean, then centered variance) for numerical robustness.
        inv_hw = 1.0 / hw
        mu = jnp.sum(y, axis=1, keepdims=True) * inv_hw
        yc = y - mu
        var = jnp.sum(yc * yc, axis=1, keepdims=True) * inv_hw
        return yc * jax.lax.rsqrt(var + eps)

    def blk(o, wa_ref, zb_ref, wb_ref, bb_ref):
        # ReLU(Wb @ ReLU(Wa[:, :C] @ o + (Wa[:, C:] @ z + ba)) + bb); the
        # channel concat with z_expand is eliminated algebraically (zb).
        # NOTE: at dim=4/c1=8 these contractions barely use the MXU; kept as
        # jnp.dot for generality (right shape at production channel counts).
        h = jnp.dot(wa_ref[...], o.astype(cd),
                    preferred_element_type=jnp.float32) + zb_ref[...]
        h = jnp.maximum(h, 0.0)
        v = jnp.dot(wb_ref[...], h.astype(cd),
                    preferred_element_type=jnp.float32) + bb_ref[...]
        return jnp.maximum(v, 0.0)

    x_f32 = x_ref[...].astype(jnp.float32)
    o1 = inorm(conv3x3_reflect(x_f32, w1_ref))
    o2 = blk(o1, wa1_ref, zb1_ref, wb1_ref, bb1_ref)
    o3 = inorm(conv3x3_reflect(o2, w2_ref))
    out = blk(o3, wa2_ref, zb2_ref, wb2_ref, bb2_ref) + x_f32   # residual
    o_ref[...] = out.astype(o_ref.dtype)


def mis_in_res_blk(x, z, params, *, eps=1e-5, compute_dtype=jnp.bfloat16):
    """x: (N, dim, H, W), z: (N, dim_extra).  Returns (N, dim, H, W)."""
    N, C, H, W = x.shape
    E = z.shape[1]
    c1 = C + E
    hw = H * W
    cd = compute_dtype
    f32 = jnp.float32

    # Natural layout: (N, C, H*W) is a free (bitcast) reshape of NCHW.
    # In bf16 mode the residual uses the bf16-rounded x slab (f32 mode exact).
    x_slab = x.reshape(N, C, hw).astype(cd)

    # Reflect-border masks (static, tiny, resident in VMEM).
    m = jnp.arange(hw, dtype=jnp.int32)
    w_i, h_i = m % W, m // W
    border = jnp.stack(
        [w_i == 0, w_i == W - 1, h_i == 0, h_i == H - 1]).astype(jnp.int32)

    # Conv3x3 weights as 9 taps (kh*3+kw, out, in); conv biases dropped since
    # InstanceNorm(affine=False) cancels any per-channel pre-norm constant.
    def taps(w):
        return jnp.transpose(w, (2, 3, 0, 1)).reshape(9, C, C).astype(cd)
    w1_taps, w2_taps = taps(params["conv1_w"]), taps(params["conv2_w"])

    # Fold z into a per-image bias for the first 1x1 conv of each blk.
    def zbias(wa, ba):
        zb = jnp.einsum("oc,nc->no", wa[:, C:].astype(f32), z.astype(f32))
        return (zb + ba[None, :]).reshape(N, c1, 1).astype(f32)
    zb1 = zbias(params["blk1_wa"], params["blk1_ba"])
    zb2 = zbias(params["blk2_wa"], params["blk2_ba"])

    wa1 = params["blk1_wa"][:, :C].astype(cd)
    wa2 = params["blk2_wa"][:, :C].astype(cd)
    wb1 = params["blk1_wb"].astype(cd)
    wb2 = params["blk2_wb"].astype(cd)
    bb1 = params["blk1_bb"].reshape(C, 1).astype(f32)
    bb2 = params["blk2_bb"].reshape(C, 1).astype(f32)

    def per_image(shape):     # one lane-dense slab / per-image bias per step
        return pl.BlockSpec((None,) + shape,
                            lambda n, _s=shape: (n,) + (0,) * len(_s))

    def resident(shape):      # small weight operand, same block every step
        return pl.BlockSpec(shape, lambda n, _s=shape: (0,) * len(_s))

    kernel = functools.partial(_misin_resblk_kernel, W=W, eps=eps,
                               compute_dtype=cd)
    # TODO(synk): for production channel counts / spatial sizes, add an H*W
    # tile grid axis (marked "arbitrary") carrying IN sum/sum-of-squares across
    # tiles and set vmem_limit_bytes (v7x has only 64 MiB VMEM); one full image
    # per step is sized for small dims.  dim=4 also only half-fills f32
    # sublanes of the output block; stacking 2 images per step would fix that.
    out_slab = pl.pallas_call(
        kernel,
        out_shape=jax.ShapeDtypeStruct((N, C, hw), x.dtype),
        grid=(N,),
        in_specs=[
            resident((4, hw)),       # border masks
            per_image((C, hw)),      # x slab
            resident((9, C, C)),     # conv1 taps
            per_image((c1, 1)),      # zb1
            resident((c1, C)),       # Wa1 (o-part)
            resident((C, c1)),       # Wb1
            resident((C, 1)),        # bb1
            resident((9, C, C)),     # conv2 taps
            per_image((c1, 1)),      # zb2
            resident((c1, C)),       # Wa2 (o-part)
            resident((C, c1)),       # Wb2
            resident((C, 1)),        # bb2
        ],
        out_specs=per_image((C, hw)),
        compiler_params=pltpu.CompilerParams(
            dimension_semantics=("parallel",)),
    )(border, x_slab, w1_taps, zb1, wa1, wb1, bb1,
      w2_taps, zb2, wa2, wb2, bb2)
    return out_slab.reshape(N, C, H, W)


def _reference(x, z, params, eps=1e-5):
    """Pure-JAX reference of MisINResBlk.forward (NCHW, matches PyTorch)."""
    def conv3x3(u, w, b):
        up = jnp.pad(u, ((0, 0), (0, 0), (1, 1), (1, 1)), mode="reflect")
        y = jax.lax.conv_general_dilated(
            up, w, window_strides=(1, 1), padding="VALID",
            dimension_numbers=("NCHW", "OIHW", "NCHW"))
        return y + b.reshape(1, -1, 1, 1)

    def inorm(y):
        mu = jnp.mean(y, axis=(2, 3), keepdims=True)
        var = jnp.mean((y - mu) ** 2, axis=(2, 3), keepdims=True)
        return (y - mu) / jnp.sqrt(var + eps)

    def blk(u, wa, ba, wb, bb):
        h = jnp.einsum("oc,nchw->nohw", wa, u) + ba.reshape(1, -1, 1, 1)
        h = jnp.maximum(h, 0.0)
        v = jnp.einsum("oc,nchw->nohw", wb, h) + bb.reshape(1, -1, 1, 1)
        return jnp.maximum(v, 0.0)

    N, C, H, W = x.shape
    zexp = jnp.broadcast_to(z[:, :, None, None], (N, z.shape[1], H, W))
    o1 = inorm(conv3x3(x, params["conv1_w"], params["conv1_b"]))
    o2 = blk(jnp.concatenate([o1, zexp], axis=1),
             params["blk1_wa"], params["blk1_ba"],
             params["blk1_wb"], params["blk1_bb"])
    o3 = inorm(conv3x3(o2, params["conv2_w"], params["conv2_b"]))
    out = blk(jnp.concatenate([o3, zexp], axis=1),
              params["blk2_wa"], params["blk2_ba"],
              params["blk2_wb"], params["blk2_bb"])
    return out + x


if __name__ == "__main__":
    # MisINResBlk(dim=4, dim_extra=4); x: (2, 4, 16, 16), z: (2, 4)
    dim, dim_extra = 4, 4
    N, H, W = 2, 16, 16
    c1 = dim + dim_extra
    f32 = jnp.float32

    key = jax.random.PRNGKey(0)
    ks = jax.random.split(key, 16)

    def gauss(k, shape):   # gaussian_weights_init: conv weights ~ N(0, 0.02)
        return 0.02 * jax.random.normal(k, shape, dtype=f32)

    def small(k, shape):   # biases (default init path, untouched by gaussian init)
        return 0.01 * jax.random.normal(k, shape, dtype=f32)

    x = jax.random.normal(ks[0], (N, dim, H, W), dtype=f32)
    z = jax.random.normal(ks[1], (N, dim_extra), dtype=f32)

    params = {
        "conv1_w": gauss(ks[2], (dim, dim, 3, 3)),
        "conv1_b": small(ks[3], (dim,)),      # mathematically cancelled by IN
        "conv2_w": gauss(ks[4], (dim, dim, 3, 3)),
        "conv2_b": small(ks[5], (dim,)),      # mathematically cancelled by IN
        # 1x1 conv weights stored as (out_ch, in_ch) (kernel dims squeezed).
        "blk1_wa": gauss(ks[6], (c1, c1)),
        "blk1_ba": small(ks[7], (c1,)),
        "blk1_wb": gauss(ks[8], (dim, c1)),
        "blk1_bb": small(ks[9], (dim,)),
        "blk2_wa": gauss(ks[10], (c1, c1)),
        "blk2_ba": small(ks[11], (c1,)),
        "blk2_wb": gauss(ks[12], (dim, c1)),
        "blk2_bb": small(ks[13], (dim,)),
    }

    ref = _reference(x, z, params)

    # Exact-math path (f32 MXU operands): tight check.
    run_f32 = jax.jit(functools.partial(mis_in_res_blk,
                                        compute_dtype=jnp.float32))
    out_f32 = jax.block_until_ready(run_f32(x, z, params))
    assert out_f32.shape == (N, dim, H, W)
    err32 = float(jnp.max(jnp.abs(out_f32 - ref)))
    assert err32 < 1e-4, f"f32 max abs err {err32}"

    # Default bf16-operand path (f32 accumulation/IN/ReLU; residual slab is
    # bf16-rounded): loose check.
    run_bf16 = jax.jit(mis_in_res_blk)
    out_bf16 = jax.block_until_ready(run_bf16(x, z, params))
    err16 = float(jnp.max(jnp.abs(out_bf16 - ref)))
    assert err16 < 5e-2, f"bf16 max abs err {err16}"

    print("KERNEL_OK")
</pallas_src>

<mosaic_0001>
module attributes {stable_mosaic.version = 11 : i64} {
  func.func @_misin_resblk_kernel(%arg0: i32, %arg1: memref<4x256xi32, #tpu.memory_space<vmem>>, %arg2: memref<1x4x256xf32, #tpu.memory_space<vmem>>, %arg3: memref<9x4x4xf32, #tpu.memory_space<vmem>>, %arg4: memref<1x8x1xf32, #tpu.memory_space<vmem>>, %arg5: memref<8x4xf32, #tpu.memory_space<vmem>>, %arg6: memref<4x8xf32, #tpu.memory_space<vmem>>, %arg7: memref<4x1xf32, #tpu.memory_space<vmem>>, %arg8: memref<9x4x4xf32, #tpu.memory_space<vmem>>, %arg9: memref<1x8x1xf32, #tpu.memory_space<vmem>>, %arg10: memref<8x4xf32, #tpu.memory_space<vmem>>, %arg11: memref<4x8xf32, #tpu.memory_space<vmem>>, %arg12: memref<4x1xf32, #tpu.memory_space<vmem>>, %arg13: memref<1x4x256xf32, #tpu.memory_space<vmem>>) attributes {dimension_semantics = [#tpu.dimension_semantics<parallel>], iteration_bounds = array<i64: 2>, scalar_prefetch = 0 : i64, scratch_operands = 0 : i64, tpu.core_type = #tpu.core_type<tc>, window_params = [{pipeline_mode = #tpu.pipeline_mode<synchronous>, transform_indices = @transform_0, window_bounds = array<i64: 4, 256>}, {transform_indices = @transform_1, window_bounds = array<i64: 1, 4, 256>}, {pipeline_mode = #tpu.pipeline_mode<synchronous>, transform_indices = @transform_2, window_bounds = array<i64: 9, 4, 4>}, {transform_indices = @transform_3, window_bounds = array<i64: 1, 8, 1>}, {pipeline_mode = #tpu.pipeline_mode<synchronous>, transform_indices = @transform_4, window_bounds = array<i64: 8, 4>}, {pipeline_mode = #tpu.pipeline_mode<synchronous>, transform_indices = @transform_5, window_bounds = array<i64: 4, 8>}, {pipeline_mode = #tpu.pipeline_mode<synchronous>, transform_indices = @transform_6, window_bounds = array<i64: 4, 1>}, {pipeline_mode = #tpu.pipeline_mode<synchronous>, transform_indices = @transform_7, window_bounds = array<i64: 9, 4, 4>}, {transform_indices = @transform_8, window_bounds = array<i64: 1, 8, 1>}, {pipeline_mode = #tpu.pipeline_mode<synchronous>, transform_indices = @transform_9, window_bounds = array<i64: 8, 4>}, {pipeline_mode = #tpu.pipeline_mode<synchronous>, transform_indices = @transform_10, window_bounds = array<i64: 4, 8>}, {pipeline_mode = #tpu.pipeline_mode<synchronous>, transform_indices = @transform_11, window_bounds = array<i64: 4, 1>}, {transform_indices = @transform_12, window_bounds = array<i64: 1, 4, 256>}]} {
    %c0 = arith.constant 0 : index
    %c0_0 = arith.constant 0 : index
    %0 = vector.load %arg1[%c0, %c0_0] : memref<4x256xi32, #tpu.memory_space<vmem>>, vector<4x256xi32>
    %1 = vector.extract_strided_slice %0 {offsets = [0, 0], sizes = [1, 256], strides = [1, 1]} : vector<4x256xi32> to vector<1x256xi32>
    %2 = vector.shape_cast %1 : vector<1x256xi32> to vector<1x256xi32>
    %3 = vector.broadcast %2 : vector<1x256xi32> to vector<4x256xi32>
    %c0_i32 = arith.constant 0 : i32
    %4 = vector.broadcast %c0_i32 : i32 to vector<4x256xi32>
    %5 = arith.cmpi ne, %3, %4 : vector<4x256xi32>
    %6 = vector.extract_strided_slice %0 {offsets = [1, 0], sizes = [1, 256], strides = [1, 1]} : vector<4x256xi32> to vector<1x256xi32>
    %7 = vector.shape_cast %6 : vector<1x256xi32> to vector<1x256xi32>
    %8 = vector.broadcast %7 : vector<1x256xi32> to vector<4x256xi32>
    %c0_i32_1 = arith.constant 0 : i32
    %9 = vector.broadcast %c0_i32_1 : i32 to vector<4x256xi32>
    %10 = arith.cmpi ne, %8, %9 : vector<4x256xi32>
    %11 = vector.extract_strided_slice %0 {offsets = [2, 0], sizes = [1, 256], strides = [1, 1]} : vector<4x256xi32> to vector<1x256xi32>
    %12 = vector.shape_cast %11 : vector<1x256xi32> to vector<1x256xi32>
    %13 = vector.broadcast %12 : vector<1x256xi32> to vector<4x256xi32>
    %c0_i32_2 = arith.constant 0 : i32
    %14 = vector.broadcast %c0_i32_2 : i32 to vector<4x256xi32>
    %15 = arith.cmpi ne, %13, %14 : vector<4x256xi32>
    %16 = vector.extract_strided_slice %0 {offsets = [3, 0], sizes = [1, 256], strides = [1, 1]} : vector<4x256xi32> to vector<1x256xi32>
    %17 = vector.shape_cast %16 : vector<1x256xi32> to vector<1x256xi32>
    %18 = vector.broadcast %17 : vector<1x256xi32> to vector<4x256xi32>
    %c0_i32_3 = arith.constant 0 : i32
    %19 = vector.broadcast %c0_i32_3 : i32 to vector<4x256xi32>
    %20 = arith.cmpi ne, %18, %19 : vector<4x256xi32>
    %c0_4 = arith.constant 0 : index
    %c0_5 = arith.constant 0 : index
    %c0_6 = arith.constant 0 : index
    %21 = vector.load %arg2[%c0_4, %c0_5, %c0_6] : memref<1x4x256xf32, #tpu.memory_space<vmem>>, vector<1x4x256xf32>
    %22 = vector.shape_cast %21 : vector<1x4x256xf32> to vector<4x256xf32>
    %c255_i32 = arith.constant 255 : i32
    %23 = tpu.dynamic_rotate %22 by %c255_i32 dim 1 : vector<4x256xf32>, i32 -> vector<4x256xf32>
    %c1_i32 = arith.constant 1 : i32
    %24 = tpu.dynamic_rotate %22 by %c1_i32 dim 1 : vector<4x256xf32>, i32 -> vector<4x256xf32>
    %25 = arith.select %5, %23, %24 : vector<4x256xi1>, vector<4x256xf32>
    %26 = arith.select %10, %24, %23 : vector<4x256xi1>, vector<4x256xf32>
    %c240_i32 = arith.constant 240 : i32
    %27 = tpu.dynamic_rotate %25 by %c240_i32 dim 1 : vector<4x256xf32>, i32 -> vector<4x256xf32>
    %c16_i32 = arith.constant 16 : i32
    %28 = tpu.dynamic_rotate %25 by %c16_i32 dim 1 : vector<4x256xf32>, i32 -> vector<4x256xf32>
    %29 = arith.select %15, %27, %28 : vector<4x256xi1>, vector<4x256xf32>
    %30 = arith.select %20, %28, %27 : vector<4x256xi1>, vector<4x256xf32>
    %c0_7 = arith.constant 0 : index
    %c0_8 = arith.constant 0 : index
    %c0_9 = arith.constant 0 : index
    %31 = vector.load %arg3[%c0_7, %c0_8, %c0_9] : memref<9x4x4xf32, #tpu.memory_space<vmem>>, vector<1x4x4xf32>
    %32 = vector.shape_cast %31 : vector<1x4x4xf32> to vector<4x4xf32>
    %cst = arith.constant dense<0.000000e+00> : vector<4x256xf32>
    %33 = tpu.matmul %32, %29, %cst {dimension_numbers = #tpu.dot_dimension_numbers<[1], [0], [0], [1], [0, 0, 1, 1], [], []>} : vector<4x4xf32>, vector<4x256xf32>, vector<4x256xf32> -> vector<4x256xf32>
    %c3 = arith.constant 3 : index
    %c0_10 = arith.constant 0 : index
    %c0_11 = arith.constant 0 : index
    %34 = vector.load %arg3[%c3, %c0_10, %c0_11] : memref<9x4x4xf32, #tpu.memory_space<vmem>>, vector<1x4x4xf32>
    %35 = vector.shape_cast %34 : vector<1x4x4xf32> to vector<4x4xf32>
    %cst_12 = arith.constant dense<0.000000e+00> : vector<4x256xf32>
    %36 = tpu.matmul %35, %25, %cst_12 {dimension_numbers = #tpu.dot_dimension_numbers<[1], [0], [0], [1], [0, 0, 1, 1], [], []>} : vector<4x4xf32>, vector<4x256xf32>, vector<4x256xf32> -> vector<4x256xf32>
    %37 = arith.addf %33, %36 : vector<4x256xf32>
    %c6 = arith.constant 6 : index
    %c0_13 = arith.constant 0 : index
    %c0_14 = arith.constant 0 : index
    %38 = vector.load %arg3[%c6, %c0_13, %c0_14] : memref<9x4x4xf32, #tpu.memory_space<vmem>>, vector<1x4x4xf32>
    %39 = vector.shape_cast %38 : vector<1x4x4xf32> to vector<4x4xf32>
    %cst_15 = arith.constant dense<0.000000e+00> : vector<4x256xf32>
    %40 = tpu.matmul %39, %30, %cst_15 {dimension_numbers = #tpu.dot_dimension_numbers<[1], [0], [0], [1], [0, 0, 1, 1], [], []>} : vector<4x4xf32>, vector<4x256xf32>, vector<4x256xf32> -> vector<4x256xf32>
    %41 = arith.addf %37, %40 : vector<4x256xf32>
    %c240_i32_16 = arith.constant 240 : i32
    %42 = tpu.dynamic_rotate %22 by %c240_i32_16 dim 1 : vector<4x256xf32>, i32 -> vector<4x256xf32>
    %c16_i32_17 = arith.constant 16 : i32
    %43 = tpu.dynamic_rotate %22 by %c16_i32_17 dim 1 : vector<4x256xf32>, i32 -> vector<4x256xf32>
    %44 = arith.select %15, %42, %43 : vector<4x256xi1>, vector<4x256xf32>
    %45 = arith.select %20, %43, %42 : vector<4x256xi1>, vector<4x256xf32>
    %c1 = arith.constant 1 : index
    %c0_18 = arith.constant 0 : index
    %c0_19 = arith.constant 0 : index
    %46 = vector.load %arg3[%c1, %c0_18, %c0_19] : memref<9x4x4xf32, #tpu.memory_space<vmem>>, vector<1x4x4xf32>
    %47 = vector.shape_cast %46 : vector<1x4x4xf32> to vector<4x4xf32>
    %cst_20 = arith.constant dense<0.000000e+00> : vector<4x256xf32>
    %48 = tpu.matmul %47, %44, %cst_20 {dimension_numbers = #tpu.dot_dimension_numbers<[1], [0], [0], [1], [0, 0, 1, 1], [], []>} : vector<4x4xf32>, vector<4x256xf32>, vector<4x256xf32> -> vector<4x256xf32>
    %49 = arith.addf %41, %48 : vector<4x256xf32>
    %c4 = arith.constant 4 : index
    %c0_21 = arith.constant 0 : index
    %c0_22 = arith.constant 0 : index
    %50 = vector.load %arg3[%c4, %c0_21, %c0_22] : memref<9x4x4xf32, #tpu.memory_space<vmem>>, vector<1x4x4xf32>
    %51 = vector.shape_cast %50 : vector<1x4x4xf32> to vector<4x4xf32>
    %cst_23 = arith.constant dense<0.000000e+00> : vector<4x256xf32>
    %52 = tpu.matmul %51, %22, %cst_23 {dimension_numbers = #tpu.dot_dimension_numbers<[1], [0], [0], [1], [0, 0, 1, 1], [], []>} : vector<4x4xf32>, vector<4x256xf32>, vector<4x256xf32> -> vector<4x256xf32>
    %53 = arith.addf %49, %52 : vector<4x256xf32>
    %c7 = arith.constant 7 : index
    %c0_24 = arith.constant 0 : index
    %c0_25 = arith.constant 0 : index
    %54 = vector.load %arg3[%c7, %c0_24, %c0_25] : memref<9x4x4xf32, #tpu.memory_space<vmem>>, vector<1x4x4xf32>
    %55 = vector.shape_cast %54 : vector<1x4x4xf32> to vector<4x4xf32>
    %cst_26 = arith.constant dense<0.000000e+00> : vector<4x256xf32>
    %56 = tpu.matmul %55, %45, %cst_26 {dimension_numbers = #tpu.dot_dimension_numbers<[1], [0], [0], [1], [0, 0, 1, 1], [], []>} : vector<4x4xf32>, vector<4x256xf32>, vector<4x256xf32> -> vector<4x256xf32>
    %57 = arith.addf %53, %56 : vector<4x256xf32>
    %c240_i32_27 = arith.constant 240 : i32
    %58 = tpu.dynamic_rotate %26 by %c240_i32_27 dim 1 : vector<4x256xf32>, i32 -> vector<4x256xf32>
    %c16_i32_28 = arith.constant 16 : i32
    %59 = tpu.dynamic_rotate %26 by %c16_i32_28 dim 1 : vector<4x256xf32>, i32 -> vector<4x256xf32>
    %60 = arith.select %15, %58, %59 : vector<4x256xi1>, vector<4x256xf32>
    %61 = arith.select %20, %59, %58 : vector<4x256xi1>, vector<4x256xf32>
    %c2 = arith.constant 2 : index
    %c0_29 = arith.constant 0 : index
    %c0_30 = arith.constant 0 : index
    %62 = vector.load %arg3[%c2, %c0_29, %c0_30] : memref<9x4x4xf32, #tpu.memory_space<vmem>>, vector<1x4x4xf32>
    %63 = vector.shape_cast %62 : vector<1x4x4xf32> to vector<4x4xf32>
    %cst_31 = arith.constant dense<0.000000e+00> : vector<4x256xf32>
    %64 = tpu.matmul %63, %60, %cst_31 {dimension_numbers = #tpu.dot_dimension_numbers<[1], [0], [0], [1], [0, 0, 1, 1], [], []>} : vector<4x4xf32>, vector<4x256xf32>, vector<4x256xf32> -> vector<4x256xf32>
    %65 = arith.addf %57, %64 : vector<4x256xf32>
    %c5 = arith.constant 5 : index
    %c0_32 = arith.constant 0 : index
    %c0_33 = arith.constant 0 : index
    %66 = vector.load %arg3[%c5, %c0_32, %c0_33] : memref<9x4x4xf32, #tpu.memory_space<vmem>>, vector<1x4x4xf32>
    %67 = vector.shape_cast %66 : vector<1x4x4xf32> to vector<4x4xf32>
    %cst_34 = arith.constant dense<0.000000e+00> : vector<4x256xf32>
    %68 = tpu.matmul %67, %26, %cst_34 {dimension_numbers = #tpu.dot_dimension_numbers<[1], [0], [0], [1], [0, 0, 1, 1], [], []>} : vector<4x4xf32>, vector<4x256xf32>, vector<4x256xf32> -> vector<4x256xf32>
    %69 = arith.addf %65, %68 : vector<4x256xf32>
    %c8 = arith.constant 8 : index
    %c0_35 = arith.constant 0 : index
    %c0_36 = arith.constant 0 : index
    %70 = vector.load %arg3[%c8, %c0_35, %c0_36] : memref<9x4x4xf32, #tpu.memory_space<vmem>>, vector<1x4x4xf32>
    %71 = vector.shape_cast %70 : vector<1x4x4xf32> to vector<4x4xf32>
    %cst_37 = arith.constant dense<0.000000e+00> : vector<4x256xf32>
    %72 = tpu.matmul %71, %61, %cst_37 {dimension_numbers = #tpu.dot_dimension_numbers<[1], [0], [0], [1], [0, 0, 1, 1], [], []>} : vector<4x4xf32>, vector<4x256xf32>, vector<4x256xf32> -> vector<4x256xf32>
    %73 = arith.addf %69, %72 : vector<4x256xf32>
    %cst_38 = arith.constant dense<0.000000e+00> : vector<4xf32>
    %74 = vector.multi_reduction <add>, %73, %cst_38 [1] : vector<4x256xf32> to vector<4xf32>
    %75 = vector.shape_cast %74 : vector<4xf32> to vector<4x1xf32>
    %cst_39 = arith.constant 3.906250e-03 : f32
    %76 = vector.broadcast %cst_39 : f32 to vector<4x1xf32>
    %77 = arith.mulf %75, %76 : vector<4x1xf32>
    %78 = vector.broadcast %77 : vector<4x1xf32> to vector<4x256xf32>
    %79 = arith.subf %73, %78 : vector<4x256xf32>
    %80 = arith.mulf %79, %79 : vector<4x256xf32>
    %cst_40 = arith.constant dense<0.000000e+00> : vector<4xf32>
    %81 = vector.multi_reduction <add>, %80, %cst_40 [1] : vector<4x256xf32> to vector<4xf32>
    %82 = vector.shape_cast %81 : vector<4xf32> to vector<4x1xf32>
    %cst_41 = arith.constant 3.906250e-03 : f32
    %83 = vector.broadcast %cst_41 : f32 to vector<4x1xf32>
    %84 = arith.mulf %82, %83 : vector<4x1xf32>
    %cst_42 = arith.constant 9.99999974E-6 : f32
    %85 = vector.broadcast %cst_42 : f32 to vector<4x1xf32>
    %86 = arith.addf %84, %85 : vector<4x1xf32>
    %87 = math.rsqrt %86 : vector<4x1xf32>
    %88 = vector.broadcast %87 : vector<4x1xf32> to vector<4x256xf32>
    %89 = arith.mulf %79, %88 : vector<4x256xf32>
    %c0_43 = arith.constant 0 : index
    %c0_44 = arith.constant 0 : index
    %90 = vector.load %arg5[%c0_43, %c0_44] : memref<8x4xf32, #tpu.memory_space<vmem>>, vector<8x4xf32>
    %cst_45 = arith.constant dense<0.000000e+00> : vector<8x256xf32>
    %91 = tpu.matmul %90, %89, %cst_45 {dimension_numbers = #tpu.dot_dimension_numbers<[1], [0], [0], [1], [0, 0, 1, 1], [], []>} : vector<8x4xf32>, vector<4x256xf32>, vector<8x256xf32> -> vector<8x256xf32>
    %c0_46 = arith.constant 0 : index
    %c0_47 = arith.constant 0 : index
    %c0_48 = arith.constant 0 : index
    %92 = vector.load %arg4[%c0_46, %c0_47, %c0_48] : memref<1x8x1xf32, #tpu.memory_space<vmem>>, vector<1x8x1xf32>
    %93 = vector.shape_cast %92 : vector<1x8x1xf32> to vector<8x1xf32>
    %94 = vector.broadcast %93 : vector<8x1xf32> to vector<8x256xf32>
    %95 = arith.addf %91, %94 : vector<8x256xf32>
    %cst_49 = arith.constant 0.000000e+00 : f32
    %96 = vector.broadcast %cst_49 : f32 to vector<8x256xf32>
    %97 = arith.maximumf %95, %96 : vector<8x256xf32>
    %c0_50 = arith.constant 0 : index
    %c0_51 = arith.constant 0 : index
    %98 = vector.load %arg6[%c0_50, %c0_51] : memref<4x8xf32, #tpu.memory_space<vmem>>, vector<4x8xf32>
    %cst_52 = arith.constant dense<0.000000e+00> : vector<4x256xf32>
    %99 = tpu.matmul %98, %97, %cst_52 {dimension_numbers = #tpu.dot_dimension_numbers<[1], [0], [0], [1], [0, 0, 1, 1], [], []>} : vector<4x8xf32>, vector<8x256xf32>, vector<4x256xf32> -> vector<4x256xf32>
    %c0_53 = arith.constant 0 : index
    %c0_54 = arith.constant 0 : index
    %100 = vector.load %arg7[%c0_53, %c0_54] : memref<4x1xf32, #tpu.memory_space<vmem>>, vector<4x1xf32>
    %101 = vector.broadcast %100 : vector<4x1xf32> to vector<4x256xf32>
    %102 = arith.addf %99, %101 : vector<4x256xf32>
    %cst_55 = arith.constant 0.000000e+00 : f32
    %103 = vector.broadcast %cst_55 : f32 to vector<4x256xf32>
    %104 = arith.maximumf %102, %103 : vector<4x256xf32>
    %c255_i32_56 = arith.constant 255 : i32
    %105 = tpu.dynamic_rotate %104 by %c255_i32_56 dim 1 : vector<4x256xf32>, i32 -> vector<4x256xf32>
    %c1_i32_57 = arith.constant 1 : i32
    %106 = tpu.dynamic_rotate %104 by %c1_i32_57 dim 1 : vector<4x256xf32>, i32 -> vector<4x256xf32>
    %107 = arith.select %5, %105, %106 : vector<4x256xi1>, vector<4x256xf32>
    %108 = arith.select %10, %106, %105 : vector<4x256xi1>, vector<4x256xf32>
    %c240_i32_58 = arith.constant 240 : i32
    %109 = tpu.dynamic_rotate %107 by %c240_i32_58 dim 1 : vector<4x256xf32>, i32 -> vector<4x256xf32>
    %c16_i32_59 = arith.constant 16 : i32
    %110 = tpu.dynamic_rotate %107 by %c16_i32_59 dim 1 : vector<4x256xf32>, i32 -> vector<4x256xf32>
    %111 = arith.select %15, %109, %110 : vector<4x256xi1>, vector<4x256xf32>
    %112 = arith.select %20, %110, %109 : vector<4x256xi1>, vector<4x256xf32>
    %c0_60 = arith.constant 0 : index
    %c0_61 = arith.constant 0 : index
    %c0_62 = arith.constant 0 : index
    %113 = vector.load %arg8[%c0_60, %c0_61, %c0_62] : memref<9x4x4xf32, #tpu.memory_space<vmem>>, vector<1x4x4xf32>
    %114 = vector.shape_cast %113 : vector<1x4x4xf32> to vector<4x4xf32>
    %cst_63 = arith.constant dense<0.000000e+00> : vector<4x256xf32>
    %115 = tpu.matmul %114, %111, %cst_63 {dimension_numbers = #tpu.dot_dimension_numbers<[1], [0], [0], [1], [0, 0, 1, 1], [], []>} : vector<4x4xf32>, vector<4x256xf32>, vector<4x256xf32> -> vector<4x256xf32>
    %c3_64 = arith.constant 3 : index
    %c0_65 = arith.constant 0 : index
    %c0_66 = arith.constant 0 : index
    %116 = vector.load %arg8[%c3_64, %c0_65, %c0_66] : memref<9x4x4xf32, #tpu.memory_space<vmem>>, vector<1x4x4xf32>
    %117 = vector.shape_cast %116 : vector<1x4x4xf32> to vector<4x4xf32>
    %cst_67 = arith.constant dense<0.000000e+00> : vector<4x256xf32>
    %118 = tpu.matmul %117, %107, %cst_67 {dimension_numbers = #tpu.dot_dimension_numbers<[1], [0], [0], [1], [0, 0, 1, 1], [], []>} : vector<4x4xf32>, vector<4x256xf32>, vector<4x256xf32> -> vector<4x256xf32>
    %119 = arith.addf %115, %118 : vector<4x256xf32>
    %c6_68 = arith.constant 6 : index
    %c0_69 = arith.constant 0 : index
    %c0_70 = arith.constant 0 : index
    %120 = vector.load %arg8[%c6_68, %c0_69, %c0_70] : memref<9x4x4xf32, #tpu.memory_space<vmem>>, vector<1x4x4xf32>
    %121 = vector.shape_cast %120 : vector<1x4x4xf32> to vector<4x4xf32>
    %cst_71 = arith.constant dense<0.000000e+00> : vector<4x256xf32>
    %122 = tpu.matmul %121, %112, %cst_71 {dimension_numbers = #tpu.dot_dimension_numbers<[1], [0], [0], [1], [0, 0, 1, 1], [], []>} : vector<4x4xf32>, vector<4x256xf32>, vector<4x256xf32> -> vector<4x256xf32>
    %123 = arith.addf %119, %122 : vector<4x256xf32>
    %c240_i32_72 = arith.constant 240 : i32
    %124 = tpu.dynamic_rotate %104 by %c240_i32_72 dim 1 : vector<4x256xf32>, i32 -> vector<4x256xf32>
    %c16_i32_73 = arith.constant 16 : i32
    %125 = tpu.dynamic_rotate %104 by %c16_i32_73 dim 1 : vector<4x256xf32>, i32 -> vector<4x256xf32>
    %126 = arith.select %15, %124, %125 : vector<4x256xi1>, vector<4x256xf32>
    %127 = arith.select %20, %125, %124 : vector<4x256xi1>, vector<4x256xf32>
    %c1_74 = arith.constant 1 : index
    %c0_75 = arith.constant 0 : index
    %c0_76 = arith.constant 0 : index
    %128 = vector.load %arg8[%c1_74, %c0_75, %c0_76] : memref<9x4x4xf32, #tpu.memory_space<vmem>>, vector<1x4x4xf32>
    %129 = vector.shape_cast %128 : vector<1x4x4xf32> to vector<4x4xf32>
    %cst_77 = arith.constant dense<0.000000e+00> : vector<4x256xf32>
    %130 = tpu.matmul %129, %126, %cst_77 {dimension_numbers = #tpu.dot_dimension_numbers<[1], [0], [0], [1], [0, 0, 1, 1], [], []>} : vector<4x4xf32>, vector<4x256xf32>, vector<4x256xf32> -> vector<4x256xf32>
    %131 = arith.addf %123, %130 : vector<4x256xf32>
    %c4_78 = arith.constant 4 : index
    %c0_79 = arith.constant 0 : index
    %c0_80 = arith.constant 0 : index
    %132 = vector.load %arg8[%c4_78, %c0_79, %c0_80] : memref<9x4x4xf32, #tpu.memory_space<vmem>>, vector<1x4x4xf32>
    %133 = vector.shape_cast %132 : vector<1x4x4xf32> to vector<4x4xf32>
    %cst_81 = arith.constant dense<0.000000e+00> : vector<4x256xf32>
    %134 = tpu.matmul %133, %104, %cst_81 {dimension_numbers = #tpu.dot_dimension_numbers<[1], [0], [0], [1], [0, 0, 1, 1], [], []>} : vector<4x4xf32>, vector<4x256xf32>, vector<4x256xf32> -> vector<4x256xf32>
    %135 = arith.addf %131, %134 : vector<4x256xf32>
    %c7_82 = arith.constant 7 : index
    %c0_83 = arith.constant 0 : index
    %c0_84 = arith.constant 0 : index
    %136 = vector.load %arg8[%c7_82, %c0_83, %c0_84] : memref<9x4x4xf32, #tpu.memory_space<vmem>>, vector<1x4x4xf32>
    %137 = vector.shape_cast %136 : vector<1x4x4xf32> to vector<4x4xf32>
    %cst_85 = arith.constant dense<0.000000e+00> : vector<4x256xf32>
    %138 = tpu.matmul %137, %127, %cst_85 {dimension_numbers = #tpu.dot_dimension_numbers<[1], [0], [0], [1], [0, 0, 1, 1], [], []>} : vector<4x4xf32>, vector<4x256xf32>, vector<4x256xf32> -> vector<4x256xf32>
    %139 = arith.addf %135, %138 : vector<4x256xf32>
    %c240_i32_86 = arith.constant 240 : i32
    %140 = tpu.dynamic_rotate %108 by %c240_i32_86 dim 1 : vector<4x256xf32>, i32 -> vector<4x256xf32>
    %c16_i32_87 = arith.constant 16 : i32
    %141 = tpu.dynamic_rotate %108 by %c16_i32_87 dim 1 : vector<4x256xf32>, i32 -> vector<4x256xf32>
    %142 = arith.select %15, %140, %141 : vector<4x256xi1>, vector<4x256xf32>
    %143 = arith.select %20, %141, %140 : vector<4x256xi1>, vector<4x256xf32>
    %c2_88 = arith.constant 2 : index
    %c0_89 = arith.constant 0 : index
    %c0_90 = arith.constant 0 : index
    %144 = vector.load %arg8[%c2_88, %c0_89, %c0_90] : memref<9x4x4xf32, #tpu.memory_space<vmem>>, vector<1x4x4xf32>
    %145 = vector.shape_cast %144 : vector<1x4x4xf32> to vector<4x4xf32>
    %cst_91 = arith.constant dense<0.000000e+00> : vector<4x256xf32>
    %146 = tpu.matmul %145, %142, %cst_91 {dimension_numbers = #tpu.dot_dimension_numbers<[1], [0], [0], [1], [0, 0, 1, 1], [], []>} : vector<4x4xf32>, vector<4x256xf32>, vector<4x256xf32> -> vector<4x256xf32>
    %147 = arith.addf %139, %146 : vector<4x256xf32>
    %c5_92 = arith.constant 5 : index
    %c0_93 = arith.constant 0 : index
    %c0_94 = arith.constant 0 : index
    %148 = vector.load %arg8[%c5_92, %c0_93, %c0_94] : memref<9x4x4xf32, #tpu.memory_space<vmem>>, vector<1x4x4xf32>
    %149 = vector.shape_cast %148 : vector<1x4x4xf32> to vector<4x4xf32>
    %cst_95 = arith.constant dense<0.000000e+00> : vector<4x256xf32>
    %150 = tpu.matmul %149, %108, %cst_95 {dimension_numbers = #tpu.dot_dimension_numbers<[1], [0], [0], [1], [0, 0, 1, 1], [], []>} : vector<4x4xf32>, vector<4x256xf32>, vector<4x256xf32> -> vector<4x256xf32>
    %151 = arith.addf %147, %150 : vector<4x256xf32>
    %c8_96 = arith.constant 8 : index
    %c0_97 = arith.constant 0 : index
    %c0_98 = arith.constant 0 : index
    %152 = vector.load %arg8[%c8_96, %c0_97, %c0_98] : memref<9x4x4xf32, #tpu.memory_space<vmem>>, vector<1x4x4xf32>
    %153 = vector.shape_cast %152 : vector<1x4x4xf32> to vector<4x4xf32>
    %cst_99 = arith.constant dense<0.000000e+00> : vector<4x256xf32>
    %154 = tpu.matmul %153, %143, %cst_99 {dimension_numbers = #tpu.dot_dimension_numbers<[1], [0], [0], [1], [0, 0, 1, 1], [], []>} : vector<4x4xf32>, vector<4x256xf32>, vector<4x256xf32> -> vector<4x256xf32>
    %155 = arith.addf %151, %154 : vector<4x256xf32>
    %cst_100 = arith.constant dense<0.000000e+00> : vector<4xf32>
    %156 = vector.multi_reduction <add>, %155, %cst_100 [1] : vector<4x256xf32> to vector<4xf32>
    %157 = vector.shape_cast %156 : vector<4xf32> to vector<4x1xf32>
    %cst_101 = arith.constant 3.906250e-03 : f32
    %158 = vector.broadcast %cst_101 : f32 to vector<4x1xf32>
    %159 = arith.mulf %157, %158 : vector<4x1xf32>
    %160 = vector.broadcast %159 : vector<4x1xf32> to vector<4x256xf32>
    %161 = arith.subf %155, %160 : vector<4x256xf32>
    %162 = arith.mulf %161, %161 : vector<4x256xf32>
    %cst_102 = arith.constant dense<0.000000e+00> : vector<4xf32>
    %163 = vector.multi_reduction <add>, %162, %cst_102 [1] : vector<4x256xf32> to vector<4xf32>
    %164 = vector.shape_cast %163 : vector<4xf32> to vector<4x1xf32>
    %cst_103 = arith.constant 3.906250e-03 : f32
    %165 = vector.broadcast %cst_103 : f32 to vector<4x1xf32>
    %166 = arith.mulf %164, %165 : vector<4x1xf32>
    %cst_104 = arith.constant 9.99999974E-6 : f32
    %167 = vector.broadcast %cst_104 : f32 to vector<4x1xf32>
    %168 = arith.addf %166, %167 : vector<4x1xf32>
    %169 = math.rsqrt %168 : vector<4x1xf32>
    %170 = vector.broadcast %169 : vector<4x1xf32> to vector<4x256xf32>
    %171 = arith.mulf %161, %170 : vector<4x256xf32>
    %c0_105 = arith.constant 0 : index
    %c0_106 = arith.constant 0 : index
    %172 = vector.load %arg10[%c0_105, %c0_106] : memref<8x4xf32, #tpu.memory_space<vmem>>, vector<8x4xf32>
    %cst_107 = arith.constant dense<0.000000e+00> : vector<8x256xf32>
    %173 = tpu.matmul %172, %171, %cst_107 {dimension_numbers = #tpu.dot_dimension_numbers<[1], [0], [0], [1], [0, 0, 1, 1], [], []>} : vector<8x4xf32>, vector<4x256xf32>, vector<8x256xf32> -> vector<8x256xf32>
    %c0_108 = arith.constant 0 : index
    %c0_109 = arith.constant 0 : index
    %c0_110 = arith.constant 0 : index
    %174 = vector.load %arg9[%c0_108, %c0_109, %c0_110] : memref<1x8x1xf32, #tpu.memory_space<vmem>>, vector<1x8x1xf32>
    %175 = vector.shape_cast %174 : vector<1x8x1xf32> to vector<8x1xf32>
    %176 = vector.broadcast %175 : vector<8x1xf32> to vector<8x256xf32>
    %177 = arith.addf %173, %176 : vector<8x256xf32>
    %cst_111 = arith.constant 0.000000e+00 : f32
    %178 = vector.broadcast %cst_111 : f32 to vector<8x256xf32>
    %179 = arith.maximumf %177, %178 : vector<8x256xf32>
    %c0_112 = arith.constant 0 : index
    %c0_113 = arith.constant 0 : index
    %180 = vector.load %arg11[%c0_112, %c0_113] : memref<4x8xf32, #tpu.memory_space<vmem>>, vector<4x8xf32>
    %cst_114 = arith.constant dense<0.000000e+00> : vector<4x256xf32>
    %181 = tpu.matmul %180, %179, %cst_114 {dimension_numbers = #tpu.dot_dimension_numbers<[1], [0], [0], [1], [0, 0, 1, 1], [], []>} : vector<4x8xf32>, vector<8x256xf32>, vector<4x256xf32> -> vector<4x256xf32>
    %c0_115 = arith.constant 0 : index
    %c0_116 = arith.constant 0 : index
    %182 = vector.load %arg12[%c0_115, %c0_116] : memref<4x1xf32, #tpu.memory_space<vmem>>, vector<4x1xf32>
    %183 = vector.broadcast %182 : vector<4x1xf32> to vector<4x256xf32>
    %184 = arith.addf %181, %183 : vector<4x256xf32>
    %cst_117 = arith.constant 0.000000e+00 : f32
    %185 = vector.broadcast %cst_117 : f32 to vector<4x256xf32>
    %186 = arith.maximumf %184, %185 : vector<4x256xf32>
    %187 = arith.addf %186, %22 : vector<4x256xf32>
    %c0_118 = arith.constant 0 : index
    %c0_119 = arith.constant 0 : index
    %c0_120 = arith.constant 0 : index
    %188 = vector.load %arg13[%c0_118, %c0_119, %c0_120] : memref<1x4x256xf32, #tpu.memory_space<vmem>>, vector<1x4x256xf32>
    %189 = vector.shape_cast %188 : vector<1x4x256xf32> to vector<4x256xf32>
    %190 = vector.shape_cast %187 : vector<4x256xf32> to vector<1x4x256xf32>
    tpu.vector_store %arg13[%c0_118, %c0_119, %c0_120], %190 {strides = array<i32>} : memref<1x4x256xf32, #tpu.memory_space<vmem>>, vector<1x4x256xf32>,
    return
  }
  func.func @transform_0(%arg0: i32) -> (i32, i32) {
    %c0_i32 = arith.constant 0 : i32
    %c0_i32_0 = arith.constant 0 : i32
    %c0_i32_1 = arith.constant 0 : i32
    return %c0_i32, %c0_i32_0 : i32, i32
  }
  func.func @transform_1(%arg0: i32) -> (i32, i32, i32) {
    %c0_i32 = arith.constant 0 : i32
    %c0_i32_0 = arith.constant 0 : i32
    %c0_i32_1 = arith.constant 0 : i32
    return %arg0, %c0_i32, %c0_i32_0 : i32, i32, i32
  }
  func.func @transform_2(%arg0: i32) -> (i32, i32, i32) {
    %c0_i32 = arith.constant 0 : i32
    %c0_i32_0 = arith.constant 0 : i32
    %c0_i32_1 = arith.constant 0 : i32
    %c0_i32_2 = arith.constant 0 : i32
    return %c0_i32, %c0_i32_0, %c0_i32_1 : i32, i32, i32
  }
  func.func @transform_3(%arg0: i32) -> (i32, i32, i32) {
    %c0_i32 = arith.constant 0 : i32
    %c0_i32_0 = arith.constant 0 : i32
    %c0_i32_1 = arith.constant 0 : i32
    return %arg0, %c0_i32, %c0_i32_0 : i32, i32, i32
  }
  func.func @transform_4(%arg0: i32) -> (i32, i32) {
    %c0_i32 = arith.constant 0 : i32
    %c0_i32_0 = arith.constant 0 : i32
    %c0_i32_1 = arith.constant 0 : i32
    return %c0_i32, %c0_i32_0 : i32, i32
  }
  func.func @transform_5(%arg0: i32) -> (i32, i32) {
    %c0_i32 = arith.constant 0 : i32
    %c0_i32_0 = arith.constant 0 : i32
    %c0_i32_1 = arith.constant 0 : i32
    return %c0_i32, %c0_i32_0 : i32, i32
  }
  func.func @transform_6(%arg0: i32) -> (i32, i32) {
    %c0_i32 = arith.constant 0 : i32
    %c0_i32_0 = arith.constant 0 : i32
    %c0_i32_1 = arith.constant 0 : i32
    return %c0_i32, %c0_i32_0 : i32, i32
  }
  func.func @transform_7(%arg0: i32) -> (i32, i32, i32) {
    %c0_i32 = arith.constant 0 : i32
    %c0_i32_0 = arith.constant 0 : i32
    %c0_i32_1 = arith.constant 0 : i32
    %c0_i32_2 = arith.constant 0 : i32
    return %c0_i32, %c0_i32_0, %c0_i32_1 : i32, i32, i32
  }
  func.func @transform_8(%arg0: i32) -> (i32, i32, i32) {
    %c0_i32 = arith.constant 0 : i32
    %c0_i32_0 = arith.constant 0 : i32
    %c0_i32_1 = arith.constant 0 : i32
    return %arg0, %c0_i32, %c0_i32_0 : i32, i32, i32
  }
  func.func @transform_9(%arg0: i32) -> (i32, i32) {
    %c0_i32 = arith.constant 0 : i32
    %c0_i32_0 = arith.constant 0 : i32
    %c0_i32_1 = arith.constant 0 : i32
    return %c0_i32, %c0_i32_0 : i32, i32
  }
  func.func @transform_10(%arg0: i32) -> (i32, i32) {
    %c0_i32 = arith.constant 0 : i32
    %c0_i32_0 = arith.constant 0 : i32
    %c0_i32_1 = arith.constant 0 : i32
    return %c0_i32, %c0_i32_0 : i32, i32
  }
  func.func @transform_11(%arg0: i32) -> (i32, i32) {
    %c0_i32 = arith.constant 0 : i32
    %c0_i32_0 = arith.constant 0 : i32
    %c0_i32_1 = arith.constant 0 : i32
    return %c0_i32, %c0_i32_0 : i32, i32
  }
  func.func @transform_12(%arg0: i32) -> (i32, i32, i32) {
    %c0_i32 = arith.constant 0 : i32
    %c0_i32_0 = arith.constant 0 : i32
    %c0_i32_1 = arith.constant 0 : i32
    return %arg0, %c0_i32, %c0_i32_0 : i32, i32, i32
  }
}

</mosaic_0001>

<llo_original>
// kernel: mis_in_res_blk.1
$region0: #{mis_in_res_blk.1}
  #allocation0 [shape = 'u32[]', space=smem, size = 0x4, offset = 0x4, fixed_abs, tag = 'smem constant byte address 0x4 - core index']
  #allocation1 [shape = 'u32[144,128]{1,0:T(1,128)}', space=vmem, size = 0x12000, scoped, tag = 'internal scratch']
  %s0 = inlined_call_operand.vmem [shape: s32[4,256], index: 0, kind: input, shape index: {}]
  %s1 = inlined_call_operand.vmem [shape: f32[2,4,256], index: 1, kind: input, shape index: {}]
  %s2 = inlined_call_operand.vmem [shape: f32[9,4,4], index: 2, kind: input, shape index: {}]
  %s3 = inlined_call_operand.vmem [shape: f32[2,8,1], index: 3, kind: input, shape index: {}]
  %s4 = inlined_call_operand.vmem [shape: f32[8,4], index: 4, kind: input, shape index: {}]
  %s5 = inlined_call_operand.vmem [shape: f32[4,8], index: 5, kind: input, shape index: {}]
  %s6 = inlined_call_operand.vmem [shape: f32[4,1], index: 6, kind: input, shape index: {}]
  %s7 = inlined_call_operand.vmem [shape: f32[9,4,4], index: 7, kind: input, shape index: {}]
  %s8 = inlined_call_operand.vmem [shape: f32[2,8,1], index: 8, kind: input, shape index: {}]
  %s9 = inlined_call_operand.vmem [shape: f32[8,4], index: 9, kind: input, shape index: {}]
  %s10 = inlined_call_operand.vmem [shape: f32[4,8], index: 10, kind: input, shape index: {}]
  %s11 = inlined_call_operand.vmem [shape: f32[4,1], index: 11, kind: input, shape index: {}]
  %s12 = inlined_call_operand.vmem [shape: f32[2,4,256], index: 12, kind: output, shape index: {}]
  %s13 = sld [smem:[#allocation0]]
  $region81: #{mis_in_res_blk.1} parent=0
    _
  %s15 = ssub.s32 1, %s13
  %s16 = scalar_select 0, %s15, %s13
  loop: start=0, step=1, limit=4
  $region2: #{mis_in_res_blk.1} parent=0 // loop_pre_header
    _
  $region3: #{mis_in_res_blk.1} parent=0 // loop_header
    %s18 = sphi 0, %s22
    %p19 = scmp.ge.s32.totalorder %s18, 4
    %s26 = sphi 0, %s26
    %s28 = sphi 0, %s26
    %s29 = sphi 0, %s28
    %s43 = sphi 0, %s29
    %s49 = sphi 0, %s51
    %s52 = sphi 0, %s49
    %s53 = sphi 0, %s52
    %s69 = sphi 0, %s53
    %s73 = sphi 0, %s73
    %s75 = sphi 0, %s73
    %s76 = sphi 0, %s75
    %s90 = sphi 0, %s76
    %s96 = sphi 0, %s98
    %s99 = sphi 0, %s96
    %s100 = sphi 0, %s99
    %s116 = sphi 0, %s100
    %s120 = sphi 0, %s120
    %s122 = sphi 0, %s120
    %s123 = sphi 0, %s122
    %s137 = sphi 0, %s123
    %s141 = sphi 0, %s141
    %s143 = sphi 0, %s141
    %s144 = sphi 0, %s143
    %s158 = sphi 0, %s144
    %s162 = sphi 0, %s162
    %s164 = sphi 0, %s162
    %s165 = sphi 0, %s164
    %s179 = sphi 0, %s165
    %s183 = sphi 0, %s183
    %s185 = sphi 0, %s183
    %s186 = sphi 0, %s185
    %s200 = sphi 0, %s186
    %s206 = sphi 0, %s208
    %s209 = sphi 0, %s206
    %s210 = sphi 0, %s209
    %s226 = sphi 0, %s210
    %s230 = sphi 0, %s230
    %s232 = sphi 0, %s230
    %s233 = sphi 0, %s232
    %s247 = sphi 0, %s233
    %s251 = sphi 0, %s251
    %s253 = sphi 0, %s251
    %s254 = sphi 0, %s253
    %s268 = sphi 0, %s254
    %s272 = sphi 0, %s272
    %s274 = sphi 0, %s272
    %s275 = sphi 0, %s274
    %s289 = sphi 0, %s275
    %s295 = sphi 0, %s297
    %s298 = sphi 0, %s295
    %s299 = sphi 0, %s298
    %s315 = sphi 0, %s299
  $region4: #{mis_in_res_blk.1} parent=0 // loop_header_branch
    %21 = sbr.rel (%p19) target = $region8
  $region5: #{mis_in_res_blk.1} parent=0 // loop_body
    %s23 = ssub.s32 %s18, 1
    %s24 = ssub.s32 %s18, 2
    %s25 = sadd.s32 %s18, 1
    %s27 = sadd.s32 %s26, 1
    %p30 = scmp.eq.s32.totalorder %s18, 1
    %p31 = scmp.ne.s32.totalorder %s26, %s28
    %p32 = scmp.eq.s32.totalorder %s18, 0
    %p33 = por %p31, %p32
    %p34 = scmp.ne.s32.totalorder %s26, %s28
    %p35 = scmp.eq.s32.totalorder %s23, 1
    %p36 = por %p34, %p35
    %p37 = scmp.ne.s32.totalorder %s28, %s29
    %p38 = scmp.eq.s32.totalorder %s23, 0
    %p39 = por %p37, %p38
    %p40 = scmp.ne.s32.totalorder %s28, %s29
    %p41 = scmp.eq.s32.totalorder %s24, 1
    %p42 = por %p40, %p41
    %p44 = scmp.ne.s32.totalorder %s29, %s43
    %p45 = scmp.eq.s32.totalorder %s24, 0
    %p46 = por %p44, %p45
    %s47 = ssub.s32 %s18, %s25
    %p48 = scmp.eq.s32.totalorder %s47, 0
    %s50 = sadd.s32 %s49, 1
    %s51 = scalar_select %p48, %s49, %s50
    %p54 = pneg %p48
    %p55 = scmp.eq.s32.totalorder %s18, 1
    %p56 = por %p54, %p55
    %p57 = scmp.ne.s32.totalorder %s49, %s52
    %p58 = scmp.eq.s32.totalorder %s18, 0
    %p59 = por %p57, %p58
    %p60 = scmp.ne.s32.totalorder %s49, %s52
    %p61 = scmp.eq.s32.totalorder %s23, 1
    %p62 = por %p60, %p61
    %p63 = scmp.ne.s32.totalorder %s52, %s53
    %p64 = scmp.eq.s32.totalorder %s23, 0
    %p65 = por %p63, %p64
    %p66 = scmp.ne.s32.totalorder %s52, %s53
    %p67 = scmp.eq.s32.totalorder %s24, 1
    %p68 = por %p66, %p67
    %p70 = scmp.ne.s32.totalorder %s53, %s69
    %p71 = scmp.eq.s32.totalorder %s24, 0
    %p72 = por %p70, %p71
    %s74 = sadd.s32 %s73, 1
    %p77 = scmp.eq.s32.totalorder %s18, 1
    %p78 = scmp.ne.s32.totalorder %s73, %s75
    %p79 = scmp.eq.s32.totalorder %s18, 0
    %p80 = por %p78, %p79
    %p81 = scmp.ne.s32.totalorder %s73, %s75
    %p82 = scmp.eq.s32.totalorder %s23, 1
    %p83 = por %p81, %p82
    %p84 = scmp.ne.s32.totalorder %s75, %s76
    %p85 = scmp.eq.s32.totalorder %s23, 0
    %p86 = por %p84, %p85
    %p87 = scmp.ne.s32.totalorder %s75, %s76
    %p88 = scmp.eq.s32.totalorder %s24, 1
    %p89 = por %p87, %p88
    %p91 = scmp.ne.s32.totalorder %s76, %s90
    %p92 = scmp.eq.s32.totalorder %s24, 0
    %p93 = por %p91, %p92
    %s94 = ssub.s32 %s18, %s25
    %p95 = scmp.eq.s32.totalorder %s94, 0
    %s97 = sadd.s32 %s96, 1
    %s98 = scalar_select %p95, %s96, %s97
    %p101 = pneg %p95
    %p102 = scmp.eq.s32.totalorder %s18, 1
    %p103 = por %p101, %p102
    %p104 = scmp.ne.s32.totalorder %s96, %s99
    %p105 = scmp.eq.s32.totalorder %s18, 0
    %p106 = por %p104, %p105
    %p107 = scmp.ne.s32.totalorder %s96, %s99
    %p108 = scmp.eq.s32.totalorder %s23, 1
    %p109 = por %p107, %p108
    %p110 = scmp.ne.s32.totalorder %s99, %s100
    %p111 = scmp.eq.s32.totalorder %s23, 0
    %p112 = por %p110, %p111
    %p113 = scmp.ne.s32.totalorder %s99, %s100
    %p114 = scmp.eq.s32.totalorder %s24, 1
    %p115 = por %p113, %p114
    %p117 = scmp.ne.s32.totalorder %s100, %s116
    %p118 = scmp.eq.s32.totalorder %s24, 0
    %p119 = por %p117, %p118
    %s121 = sadd.s32 %s120, 1
    %p124 = scmp.eq.s32.totalorder %s18, 1
    %p125 = scmp.ne.s32.totalorder %s120, %s122
    %p126 = scmp.eq.s32.totalorder %s18, 0
    %p127 = por %p125, %p126
    %p128 = scmp.ne.s32.totalorder %s120, %s122
    %p129 = scmp.eq.s32.totalorder %s23, 1
    %p130 = por %p128, %p129
    %p131 = scmp.ne.s32.totalorder %s122, %s123
    %p132 = scmp.eq.s32.totalorder %s23, 0
    %p133 = por %p131, %p132
    %p134 = scmp.ne.s32.totalorder %s122, %s123
    %p135 = scmp.eq.s32.totalorder %s24, 1
    %p136 = por %p134, %p135
    %p138 = scmp.ne.s32.totalorder %s123, %s137
    %p139 = scmp.eq.s32.totalorder %s24, 0
    %p140 = por %p138, %p139
    %s142 = sadd.s32 %s141, 1
    %p145 = scmp.eq.s32.totalorder %s18, 1
    %p146 = scmp.ne.s32.totalorder %s141, %s143
    %p147 = scmp.eq.s32.totalorder %s18, 0
    %p148 = por %p146, %p147
    %p149 = scmp.ne.s32.totalorder %s141, %s143
    %p150 = scmp.eq.s32.totalorder %s23, 1
    %p151 = por %p149, %p150
    %p152 = scmp.ne.s32.totalorder %s143, %s144
    %p153 = scmp.eq.s32.totalorder %s23, 0
    %p154 = por %p152, %p153
    %p155 = scmp.ne.s32.totalorder %s143, %s144
    %p156 = scmp.eq.s32.totalorder %s24, 1
    %p157 = por %p155, %p156
    %p159 = scmp.ne.s32.totalorder %s144, %s158
    %p160 = scmp.eq.s32.totalorder %s24, 0
    %p161 = por %p159, %p160
    %s163 = sadd.s32 %s162, 1
    %p166 = scmp.eq.s32.totalorder %s18, 1
    %p167 = scmp.ne.s32.totalorder %s162, %s164
    %p168 = scmp.eq.s32.totalorder %s18, 0
    %p169 = por %p167, %p168
    %p170 = scmp.ne.s32.totalorder %s162, %s164
    %p171 = scmp.eq.s32.totalorder %s23, 1
    %p172 = por %p170, %p171
    %p173 = scmp.ne.s32.totalorder %s164, %s165
    %p174 = scmp.eq.s32.totalorder %s23, 0
    %p175 = por %p173, %p174
    %p176 = scmp.ne.s32.totalorder %s164, %s165
    %p177 = scmp.eq.s32.totalorder %s24, 1
    %p178 = por %p176, %p177
    %p180 = scmp.ne.s32.totalorder %s165, %s179
    %p181 = scmp.eq.s32.totalorder %s24, 0
    %p182 = por %p180, %p181
    %s184 = sadd.s32 %s183, 1
    %p187 = scmp.eq.s32.totalorder %s18, 1
    %p188 = scmp.ne.s32.totalorder %s183, %s185
    %p189 = scmp.eq.s32.totalorder %s18, 0
    %p190 = por %p188, %p189
    %p191 = scmp.ne.s32.totalorder %s183, %s185
    %p192 = scmp.eq.s32.totalorder %s23, 1
    %p193 = por %p191, %p192
    %p194 = scmp.ne.s32.totalorder %s185, %s186
    %p195 = scmp.eq.s32.totalorder %s23, 0
    %p196 = por %p194, %p195
    %p197 = scmp.ne.s32.totalorder %s185, %s186
    %p198 = scmp.eq.s32.totalorder %s24, 1
    %p199 = por %p197, %p198
    %p201 = scmp.ne.s32.totalorder %s186, %s200
    %p202 = scmp.eq.s32.totalorder %s24, 0
    %p203 = por %p201, %p202
    %s204 = ssub.s32 %s18, %s25
    %p205 = scmp.eq.s32.totalorder %s204, 0
    %s207 = sadd.s32 %s206, 1
    %s208 = scalar_select %p205, %s206, %s207
    %p211 = pneg %p205
    %p212 = scmp.eq.s32.totalorder %s18, 1
    %p213 = por %p211, %p212
    %p214 = scmp.ne.s32.totalorder %s206, %s209
    %p215 = scmp.eq.s32.totalorder %s18, 0
    %p216 = por %p214, %p215
    %p217 = scmp.ne.s32.totalorder %s206, %s209
    %p218 = scmp.eq.s32.totalorder %s23, 1
    %p219 = por %p217, %p218
    %p220 = scmp.ne.s32.totalorder %s209, %s210
    %p221 = scmp.eq.s32.totalorder %s23, 0
    %p222 = por %p220, %p221
    %p223 = scmp.ne.s32.totalorder %s209, %s210
    %p224 = scmp.eq.s32.totalorder %s24, 1
    %p225 = por %p223, %p224
    %p227 = scmp.ne.s32.totalorder %s210, %s226
    %p228 = scmp.eq.s32.totalorder %s24, 0
    %p229 = por %p227, %p228
    %s231 = sadd.s32 %s230, 1
    %p234 = scmp.eq.s32.totalorder %s18, 1
    %p235 = scmp.ne.s32.totalorder %s230, %s232
    %p236 = scmp.eq.s32.totalorder %s18, 0
    %p237 = por %p235, %p236
    %p238 = scmp.ne.s32.totalorder %s230, %s232
    %p239 = scmp.eq.s32.totalorder %s23, 1
    %p240 = por %p238, %p239
    %p241 = scmp.ne.s32.totalorder %s232, %s233
    %p242 = scmp.eq.s32.totalorder %s23, 0
    %p243 = por %p241, %p242
    %p244 = scmp.ne.s32.totalorder %s232, %s233
    %p245 = scmp.eq.s32.totalorder %s24, 1
    %p246 = por %p244, %p245
    %p248 = scmp.ne.s32.totalorder %s233, %s247
    %p249 = scmp.eq.s32.totalorder %s24, 0
    %p250 = por %p248, %p249
    %s252 = sadd.s32 %s251, 1
    %p255 = scmp.eq.s32.totalorder %s18, 1
    %p256 = scmp.ne.s32.totalorder %s251, %s253
    %p257 = scmp.eq.s32.totalorder %s18, 0
    %p258 = por %p256, %p257
    %p259 = scmp.ne.s32.totalorder %s251, %s253
    %p260 = scmp.eq.s32.totalorder %s23, 1
    %p261 = por %p259, %p260
    %p262 = scmp.ne.s32.totalorder %s253, %s254
    %p263 = scmp.eq.s32.totalorder %s23, 0
    %p264 = por %p262, %p263
    %p265 = scmp.ne.s32.totalorder %s253, %s254
    %p266 = scmp.eq.s32.totalorder %s24, 1
    %p267 = por %p265, %p266
    %p269 = scmp.ne.s32.totalorder %s254, %s268
    %p270 = scmp.eq.s32.totalorder %s24, 0
    %p271 = por %p269, %p270
    %s273 = sadd.s32 %s272, 1
    %p276 = scmp.eq.s32.totalorder %s18, 1
    %p277 = scmp.ne.s32.totalorder %s272, %s274
    %p278 = scmp.eq.s32.totalorder %s18, 0
    %p279 = por %p277, %p278
    %p280 = scmp.ne.s32.totalorder %s272, %s274
    %p281 = scmp.eq.s32.totalorder %s23, 1
    %p282 = por %p280, %p281
    %p283 = scmp.ne.s32.totalorder %s274, %s275
    %p284 = scmp.eq.s32.totalorder %s23, 0
    %p285 = por %p283, %p284
    %p286 = scmp.ne.s32.totalorder %s274, %s275
    %p287 = scmp.eq.s32.totalorder %s24, 1
    %p288 = por %p286, %p287
    %p290 = scmp.ne.s32.totalorder %s275, %s289
    %p291 = scmp.eq.s32.totalorder %s24, 0
    %p292 = por %p290, %p291
    %s293 = ssub.s32 %s18, %s25
    %p294 = scmp.eq.s32.totalorder %s293, 0
    %s296 = sadd.s32 %s295, 1
    %s297 = scalar_select %p294, %s295, %s296
    %p300 = pneg %p294
    %p301 = scmp.eq.s32.totalorder %s18, 1
    %p302 = por %p300, %p301
    %p303 = scmp.ne.s32.totalorder %s295, %s298
    %p304 = scmp.eq.s32.totalorder %s18, 0
    %p305 = por %p303, %p304
    %p306 = scmp.ne.s32.totalorder %s295, %s298
    %p307 = scmp.eq.s32.totalorder %s23, 1
    %p308 = por %p306, %p307
    %p309 = scmp.ne.s32.totalorder %s298, %s299
    %p310 = scmp.eq.s32.totalorder %s23, 0
    %p311 = por %p309, %p310
    %p312 = scmp.ne.s32.totalorder %s298, %s299
    %p313 = scmp.eq.s32.totalorder %s24, 1
    %p314 = por %p312, %p313
    %p316 = scmp.ne.s32.totalorder %s299, %s315
    %p317 = scmp.eq.s32.totalorder %s24, 0
    %p318 = por %p316, %p317
    %p319 = scmp.le.s32.totalorder 1, %s18
    %p320 = scmp.lt.s32.totalorder %s18, 3
    %p321 = pnand %p319, %p320
    %p322 = pneg %p321
    // Predicated region
    $region9: #{mis_in_res_blk.1} parent=5 // pred_check
      _
    $region10: #{mis_in_res_blk.1} parent=5 // pred_check_branch
      %324 = sbr.rel (%p321) target = $region12
    $region11: #{mis_in_res_blk.1} parent=5 // pred_region
      %s325 = ssub.s32 %s18, 1
      // Predicated region
      $region13: #{mis_in_res_blk.1} parent=11 // pred_check
        %p326 = pneg %p39
      $region14: #{mis_in_res_blk.1} parent=11 // pred_check_branch
        %328 = sbr.rel (%p326) target = $region16
      $region15: #{mis_in_res_blk.1} parent=11 // pred_region
        _
      $region16: #{mis_in_res_blk.1} parent=11 // pred_fallthru
        _
      // Predicated region
      $region17: #{mis_in_res_blk.1} parent=11 // pred_check
        %p329 = pneg %p86
      $region18: #{mis_in_res_blk.1} parent=11 // pred_check_branch
        %331 = sbr.rel (%p329) target = $region20
      $region19: #{mis_in_res_blk.1} parent=11 // pred_region
        _
      $region20: #{mis_in_res_blk.1} parent=11 // pred_fallthru
        _
      // Predicated region
      $region21: #{mis_in_res_blk.1} parent=11 // pred_check
        %p332 = pneg %p133
      $region22: #{mis_in_res_blk.1} parent=11 // pred_check_branch
        %334 = sbr.rel (%p332) target = $region24
      $region23: #{mis_in_res_blk.1} parent=11 // pred_region
        _
      $region24: #{mis_in_res_blk.1} parent=11 // pred_fallthru
        _
      // Predicated region
      $region25: #{mis_in_res_blk.1} parent=11 // pred_check
        %p335 = pneg %p154
      $region26: #{mis_in_res_blk.1} parent=11 // pred_check_branch
        %337 = sbr.rel (%p335) target = $region28
      $region27: #{mis_in_res_blk.1} parent=11 // pred_region
        _
      $region28: #{mis_in_res_blk.1} parent=11 // pred_fallthru
        _
      // Predicated region
      $region29: #{mis_in_res_blk.1} parent=11 // pred_check
        %p338 = pneg %p175
      $region30: #{mis_in_res_blk.1} parent=11 // pred_check_branch
        %340 = sbr.rel (%p338) target = $region32
      $region31: #{mis_in_res_blk.1} parent=11 // pred_region
        _
      $region32: #{mis_in_res_blk.1} parent=11 // pred_fallthru
        _
      // Predicated region
      $region33: #{mis_in_res_blk.1} parent=11 // pred_check
        %p341 = pneg %p196
      $region34: #{mis_in_res_blk.1} parent=11 // pred_check_branch
        %343 = sbr.rel (%p341) target = $region36
      $region35: #{mis_in_res_blk.1} parent=11 // pred_region
        _
      $region36: #{mis_in_res_blk.1} parent=11 // pred_fallthru
        _
      // Predicated region
      $region37: #{mis_in_res_blk.1} parent=11 // pred_check
        %p344 = pneg %p243
      $region38: #{mis_in_res_blk.1} parent=11 // pred_check_branch
        %346 = sbr.rel (%p344) target = $region40
      $region39: #{mis_in_res_blk.1} parent=11 // pred_region
        _
      $region40: #{mis_in_res_blk.1} parent=11 // pred_fallthru
        _
      // Predicated region
      $region41: #{mis_in_res_blk.1} parent=11 // pred_check
        %p347 = pneg %p264
      $region42: #{mis_in_res_blk.1} parent=11 // pred_check_branch
        %349 = sbr.rel (%p347) target = $region44
      $region43: #{mis_in_res_blk.1} parent=11 // pred_region
        _
      $region44: #{mis_in_res_blk.1} parent=11 // pred_fallthru
        _
      // Predicated region
      $region45: #{mis_in_res_blk.1} parent=11 // pred_check
        %p350 = pneg %p285
      $region46: #{mis_in_res_blk.1} parent=11 // pred_check_branch
        %352 = sbr.rel (%p350) target = $region48
      $region47: #{mis_in_res_blk.1} parent=11 // pred_region
        _
      $region48: #{mis_in_res_blk.1} parent=11 // pred_fallthru
        _
    $region12: #{mis_in_res_blk.1} parent=5 // pred_fallthru
      _
    %p353 = scmp.lt.s32.totalorder %s18, 2
    // Predicated region
    $region49: #{mis_in_res_blk.1} parent=5 // pred_check
      %p354 = pneg %p353
    $region50: #{mis_in_res_blk.1} parent=5 // pred_check_branch
      %356 = sbr.rel (%p354) target = $region52
    $region51: #{mis_in_res_blk.1} parent=5 // pred_region
      // Predicated region
      $region53: #{mis_in_res_blk.1} parent=51 // pred_check
        %p357 = pneg %p59
      $region54: #{mis_in_res_blk.1} parent=51 // pred_check_branch
        %359 = sbr.rel (%p357) target = $region56
      $region55: #{mis_in_res_blk.1} parent=51 // pred_region
        %p360 = scmp.lt.s32.totalorder %s18, 1
        %s361 = scalar_select %p360, %s18, 1
        %s362 = smul.addr %s361, 2
        %s363 = smul.addr %s362, 4
        %s364 = scalar_lea.vmem %s1, %s363
      $region56: #{mis_in_res_blk.1} parent=51 // pred_fallthru
        _
      // Predicated region
      $region57: #{mis_in_res_blk.1} parent=51 // pred_check
        %p365 = pneg %p106
      $region58: #{mis_in_res_blk.1} parent=51 // pred_check_branch
        %367 = sbr.rel (%p365) target = $region60
      $region59: #{mis_in_res_blk.1} parent=51 // pred_region
        %p368 = scmp.lt.s32.totalorder %s18, 1
        %s369 = scalar_select %p368, %s18, 1
        %s370 = smul.addr %s369, 8
        %s371 = scalar_lea.vmem %s3, %s370
      $region60: #{mis_in_res_blk.1} parent=51 // pred_fallthru
        _
      // Predicated region
      $region61: #{mis_in_res_blk.1} parent=51 // pred_check
        %p372 = pneg %p216
      $region62: #{mis_in_res_blk.1} parent=51 // pred_check_branch
        %374 = sbr.rel (%p372) target = $region64
      $region63: #{mis_in_res_blk.1} parent=51 // pred_region
        %p375 = scmp.lt.s32.totalorder %s18, 1
        %s376 = scalar_select %p375, %s18, 1
        %s377 = smul.addr %s376, 8
        %s378 = scalar_lea.vmem %s8, %s377
      $region64: #{mis_in_res_blk.1} parent=51 // pred_fallthru
        _
    $region52: #{mis_in_res_blk.1} parent=5 // pred_fallthru
      _
    %p379 = scmp.le.s32.totalorder 1, %s18
    %p380 = scmp.lt.s32.totalorder %s18, 3
    %p381 = pnand %p379, %p380
    %p382 = pneg %p381
    // Predicated region
    $region65: #{mis_in_res_blk.1} parent=5 // pred_check
      _
    $region66: #{mis_in_res_blk.1} parent=5 // pred_check_branch
      %384 = sbr.rel (%p381) target = $region68
    $region67: #{mis_in_res_blk.1} parent=5 // pred_region
      %s385 = ssub.s32 %s18, 1
      %p386 = pneg %p39
      %p387 = pneg %p36
      %p388 = scmp.lt.s32.totalorder %s23, 1
      %s389 = scalar_select %p388, %s23, 1
      %s390 = smul.addr %s389, 2
      %s391 = smul.addr %s390, 4
      %s392 = scalar_lea.vmem %s1, %s391
      %p393 = pneg %p65
      %p394 = pneg %p62
      %p395 = pneg %p86
      %p396 = pneg %p83
      %p397 = scmp.lt.s32.totalorder %s23, 1
      %s398 = scalar_select %p397, %s23, 1
      %s399 = smul.addr %s398, 8
      %s400 = scalar_lea.vmem %s3, %s399
      %p401 = pneg %p112
      %p402 = pneg %p109
      %p403 = pneg %p133
      %p404 = pneg %p130
      %p405 = pneg %p154
      %p406 = pneg %p151
      %p407 = pneg %p175
      %p408 = pneg %p172
      %p409 = pneg %p196
      %p410 = pneg %p193
      %p411 = scmp.lt.s32.totalorder %s23, 1
      %s412 = scalar_select %p411, %s23, 1
      %s413 = smul.addr %s412, 8
      %s414 = scalar_lea.vmem %s8, %s413
      %p415 = pneg %p222
      %p416 = pneg %p219
      %p417 = pneg %p243
      %p418 = pneg %p240
      %p419 = pneg %p264
      %p420 = pneg %p261
      %p421 = pneg %p285
      %p422 = pneg %p282
      %p423 = pneg %p311
      %p424 = pneg %p308
      %p425 = scmp.lt.s32.totalorder %s23, 1
      %s426 = scalar_select %p425, %s23, 1
      %s427 = smul.addr %s426, 2
      %s428 = smul.addr %s427, 4
      %s429 = scalar_lea.vmem %s12, %s428
      %p430 = scmp.lt.s32.totalorder %s23, 1
      %s431 = scalar_select %p430, %s23, 1
      %s432 = smul.addr %s431, 2
      %s433 = smul.addr %s432, 4
      %s434 = scalar_lea.vmem %s1, %s433
      %p435 = scmp.lt.s32.totalorder %s23, 1
      %s436 = scalar_select %p435, %s23, 1
      %s437 = smul.addr %s436, 8
      %s438 = scalar_lea.vmem %s3, %s437
      %p439 = scmp.lt.s32.totalorder %s23, 1
      %s440 = scalar_select %p439, %s23, 1
      %s441 = smul.addr %s440, 8
      %s442 = scalar_lea.vmem %s8, %s441
      %p443 = scmp.lt.s32.totalorder %s23, 1
      %s444 = scalar_select %p443, %s23, 1
      %s445 = smul.addr %s444, 2
      %s446 = smul.addr %s445, 4
      %s447 = scalar_lea.vmem %s12, %s446
      %v448 = vld [vmem:[%s0] sm:$0xff]
      %v449 = vlaneseq
      %v450 = vshrl.u32 %v449, 7
      %v451 = vsub.s32 0, %v450
      %v452 = vrot.slane %v448, %v451
      %v453 = vlaneseq
      %v454 = vshrl.u32 %v453, 7
      %v455 = vsub.s32 4, %v454
      %v456 = vrot.slane %v448, %v455
      %v457 = vlaneseq
      %v458 = vshrl.u32 %v457, 7
      %v459 = vsub.s32 0, %v458
      %v460 = vrot.slane %v452, %v459
      %v461 = vlaneseq
      %v462 = vshrl.u32 %v461, 7
      %v463 = vsub.s32 0, %v462
      %v464 = vrot.slane %v456, %v463
      %vm465 = vcmp.ne.s32.totalorder %v460, 0
      %vm466 = vcmp.ne.s32.totalorder %v464, 0
      %v467 = vlaneseq
      %v468 = vshrl.u32 %v467, 7
      %v469 = vsub.s32 1, %v468
      %v470 = vrot.slane %v448, %v469
      %v471 = vlaneseq
      %v472 = vshrl.u32 %v471, 7
      %v473 = vsub.s32 5, %v472
      %v474 = vrot.slane %v448, %v473
      %v475 = vlaneseq
      %v476 = vshrl.u32 %v475, 7
      %v477 = vsub.s32 1, %v476
      %v478 = vrot.slane %v470, %v477
      %v479 = vlaneseq
      %v480 = vshrl.u32 %v479, 7
      %v481 = vsub.s32 1, %v480
      %v482 = vrot.slane %v474, %v481
      %vm483 = vcmp.ne.s32.totalorder %v478, 0
      %vm484 = vcmp.ne.s32.totalorder %v482, 0
      %v485 = vlaneseq
      %v486 = vshrl.u32 %v485, 7
      %v487 = vsub.s32 2, %v486
      %v488 = vrot.slane %v448, %v487
      %v489 = vlaneseq
      %v490 = vshrl.u32 %v489, 7
      %v491 = vsub.s32 6, %v490
      %v492 = vrot.slane %v448, %v491
      %v493 = vlaneseq
      %v494 = vshrl.u32 %v493, 7
      %v495 = vsub.s32 2, %v494
      %v496 = vrot.slane %v488, %v495
      %v497 = vlaneseq
      %v498 = vshrl.u32 %v497, 7
      %v499 = vsub.s32 2, %v498
      %v500 = vrot.slane %v492, %v499
      %vm501 = vcmp.ne.s32.totalorder %v496, 0
      %vm502 = vcmp.ne.s32.totalorder %v500, 0
      %v503 = vlaneseq
      %v504 = vshrl.u32 %v503, 7
      %v505 = vsub.s32 3, %v504
      %v506 = vrot.slane %v448, %v505
      %v507 = vlaneseq
      %v508 = vshrl.u32 %v507, 7
      %v509 = vsub.s32 7, %v508
      %v510 = vrot.slane %v448, %v509
      %v511 = vlaneseq
      %v512 = vshrl.u32 %v511, 7
      %v513 = vsub.s32 3, %v512
      %v514 = vrot.slane %v506, %v513
      %v515 = vlaneseq
      %v516 = vshrl.u32 %v515, 7
      %v517 = vsub.s32 3, %v516
      %v518 = vrot.slane %v510, %v517
      %vm519 = vcmp.ne.s32.totalorder %v514, 0
      %vm520 = vcmp.ne.s32.totalorder %v518, 0
      %v521 = vld [vmem:[%s434] sm:$0xff]
      %v523 = vcombine.high %v521, %v521
      %525 = vrot.lane.b32.xlu0 %v521, 127
      %v526 = vpop.permute.xlu0 %525
      %527 = vrot.lane.b32.xlu0 %v523, 127
      %v528 = vpop.permute.xlu0 %527
      %v529 = vlaneseq
      %v530 = vand.u32 %v529, 127
      %vm531 = vcmp.lt.s32.totalorder %v530, 127
      %v532 = vsel %vm531, %v526, %v528
      %v533 = vsel %vm531, %v528, %v526
      %534 = vrot.lane.b32.xlu0 %v521, 1
      %v535 = vpop.permute.xlu0 %534
      %536 = vrot.lane.b32.xlu0 %v523, 1
      %v537 = vpop.permute.xlu0 %536
      %vm538 = vcmp.lt.s32.totalorder %v530, 1
      %v539 = vsel %vm538, %v535, %v537
      %v540 = vsel %vm538, %v537, %v535
      %v541 = vsel %vm465, %v532, %v540
      %v542 = vsel %vm466, %v533, %v539
      %v543 = vsel %vm483, %v540, %v532
      %v544 = vsel %vm484, %v539, %v533
      %545 = vrot.lane.b32.xlu0 %v541, 112
      %v546 = vpop.permute.xlu0 %545
      %547 = vrot.lane.b32.xlu0 %v542, 112
      %v548 = vpop.permute.xlu0 %547
      %vm549 = vcmp.lt.s32.totalorder %v530, 112
      %v550 = vsel %vm549, %v546, %v548
      %v551 = vsel %vm549, %v548, %v546
      %552 = vrot.lane.b32.xlu0 %v541, 16
      %v553 = vpop.permute.xlu0 %552
      %554 = vrot.lane.b32.xlu0 %v542, 16
      %v555 = vpop.permute.xlu0 %554
      %vm556 = vcmp.lt.s32.totalorder %v530, 16
      %v557 = vsel %vm556, %v553, %v555
      %v558 = vsel %vm556, %v555, %v553
      %v559 = vsel %vm501, %v550, %v558
      %v560 = vsel %vm502, %v551, %v557
      %v561 = vsel %vm519, %v558, %v550
      %v562 = vsel %vm520, %v557, %v551
      %v563 = vld [vmem:[%s2] sm:$0xf]
      %s564 = scalar_lea.vmem %s2, 12
      %v565 = vld [vmem:[%s564] sm:$0xf]
      %vm566 = vcmask 31744
      %v568 = vsel %vm566, %v565, 0
      %vm570 = vcmask 1043456
      %v572 = vsel %vm570, %v541, 0
      %v575 = vsel %vm570, %v542, 0
      %577 = vmatprep.subr.mxu0 0.0
      %578 = vmatpush1.msra.mxu0 0.0
      %579 = vmatprep.subr.mxu0 0.0
      %580 = vmatpush1.msra.mxu0 0.0
      %581 = vmatprep.subr.mxu0 0.0
      %582 = vmatpush1.msra.mxu0 0.0
      %583 = vmatprep.subr.mxu0 0.0
      %584 = vmatpush1.msra.mxu0 0.0
      %585 = vmatprep.subr.mxu0 0.0
      %586 = vmatpush1.msra.mxu0 0.0
      %587 = vmatprep.subr.mxu0 0.0
      %588 = vmatpush1.msra.mxu0 0.0
      %589 = vmatprep.subr.mxu0 0.0
      %590 = vmatpush1.msra.mxu0 0.0
      %591 = vmatprep.subr.mxu0 0.0
      %592 = vmatpush1.msra.mxu0 0.0
      %593 = vmatprep.subr.mxu0 0.0
      %594 = vmatpush1.msra.mxu0 0.0
      %595 = vmatprep.subr.mxu0 0.0
      %596 = vmatpush1.msra.mxu0 0.0
      %597 = vmatprep.subr.mxu0 0.0
      %598 = vmatpush1.msra.mxu0 0.0
      %599 = vmatprep.subr.mxu0 0.0
      %600 = vmatpush1.msra.mxu0 0.0
      %601 = vmatprep.subr.mxu0 0.0
      %602 = vmatpush1.msra.mxu0 0.0
      %603 = vmatprep.subr.mxu0 0.0
      %604 = vmatpush1.msra.mxu0 0.0
      %605 = vmatprep.subr.mxu0 0.0
      %606 = vmatpush1.msra.mxu0 0.0
      %607 = vmatprep.subr.mxu0 %v575
      %608 = vmatpush1.msra.mxu0 %v572
      %609 = vmatprep.subr.mxu0 0.0
      %610 = vmatpush2.msra.mxu0 0.0
      %611 = vmatprep.subr.mxu0 0.0
      %612 = vmatpush2.msra.mxu0 0.0
      %613 = vmatprep.subr.mxu0 0.0
      %614 = vmatpush2.msra.mxu0 0.0
      %615 = vmatprep.subr.mxu0 0.0
      %616 = vmatpush2.msra.mxu0 0.0
      %617 = vmatprep.subr.mxu0 0.0
      %618 = vmatpush2.msra.mxu0 0.0
      %619 = vmatprep.subr.mxu0 0.0
      %620 = vmatpush2.msra.mxu0 0.0
      %621 = vmatprep.subr.mxu0 0.0
      %622 = vmatpush2.msra.mxu0 0.0
      %623 = vmatprep.subr.mxu0 0.0
      %624 = vmatpush2.msra.mxu0 0.0
      %625 = vmatprep.subr.mxu0 0.0
      %626 = vmatpush2.msra.mxu0 0.0
      %627 = vmatprep.subr.mxu0 0.0
      %628 = vmatpush2.msra.mxu0 0.0
      %629 = vmatprep.subr.mxu0 0.0
      %630 = vmatpush2.msra.mxu0 0.0
      %631 = vmatprep.subr.mxu0 0.0
      %632 = vmatpush2.msra.mxu0 0.0
      %633 = vmatprep.subr.mxu0 0.0
      %634 = vmatpush2.msra.mxu0 0.0
      %635 = vmatprep.subr.mxu0 0.0
      %636 = vmatpush2.msra.mxu0 0.0
      %637 = vmatprep.subr.mxu0 0.0
      %638 = vmatpush2.msra.mxu0 0.0
      %639 = vmatprep.subr.mxu0 0.0
      %640 = vmatpush2.msra.mxu0 0.0
      %641 = vmatprep.mubr.f32.mxu0 0.0
      %642 = vmatmul.mubr.f32.gmra.mxu0 %v568
      %v643 = vpop.f32.mrf.mxu0
      %v644 = vadd.f32 0.0, %v643
      %v645 = vpop.f32.mrf.mxu0
      %v646 = vadd.f32 0.0, %v645
      %647 = vdwg.mxu0
      %v649 = vsel %vm566, %v563, 0
      %v652 = vsel %vm570, %v559, 0
      %v655 = vsel %vm570, %v560, 0
      %657 = vmatprep.subr.mxu0 0.0
      %658 = vmatpush1.msra.mxu0 0.0
      %659 = vmatprep.subr.mxu0 0.0
      %660 = vmatpush1.msra.mxu0 0.0
      %661 = vmatprep.subr.mxu0 0.0
      %662 = vmatpush1.msra.mxu0 0.0
      %663 = vmatprep.subr.mxu0 0.0
      %664 = vmatpush1.msra.mxu0 0.0
      %665 = vmatprep.subr.mxu0 0.0
      %666 = vmatpush1.msra.mxu0 0.0
      %667 = vmatprep.subr.mxu0 0.0
      %668 = vmatpush1.msra.mxu0 0.0
      %669 = vmatprep.subr.mxu0 0.0
      %670 = vmatpush1.msra.mxu0 0.0
      %671 = vmatprep.subr.mxu0 0.0
      %672 = vmatpush1.msra.mxu0 0.0
      %673 = vmatprep.subr.mxu0 0.0
      %674 = vmatpush1.msra.mxu0 0.0
      %675 = vmatprep.subr.mxu0 0.0
      %676 = vmatpush1.msra.mxu0 0.0
      %677 = vmatprep.subr.mxu0 0.0
      %678 = vmatpush1.msra.mxu0 0.0
      %679 = vmatprep.subr.mxu0 0.0
      %680 = vmatpush1.msra.mxu0 0.0
      %681 = vmatprep.subr.mxu0 0.0
      %682 = vmatpush1.msra.mxu0 0.0
      %683 = vmatprep.subr.mxu0 0.0
      %684 = vmatpush1.msra.mxu0 0.0
      %685 = vmatprep.subr.mxu0 0.0
      %686 = vmatpush1.msra.mxu0 0.0
      %687 = vmatprep.subr.mxu0 %v655
      %688 = vmatpush1.msra.mxu0 %v652
      %689 = vmatprep.subr.mxu0 0.0
      %690 = vmatpush2.msra.mxu0 0.0
      %691 = vmatprep.subr.mxu0 0.0
      %692 = vmatpush2.msra.mxu0 0.0
      %693 = vmatprep.subr.mxu0 0.0
      %694 = vmatpush2.msra.mxu0 0.0
      %695 = vmatprep.subr.mxu0 0.0
      %696 = vmatpush2.msra.mxu0 0.0
      %697 = vmatprep.subr.mxu0 0.0
      %698 = vmatpush2.msra.mxu0 0.0
      %699 = vmatprep.subr.mxu0 0.0
      %700 = vmatpush2.msra.mxu0 0.0
      %701 = vmatprep.subr.mxu0 0.0
      %702 = vmatpush2.msra.mxu0 0.0
      %703 = vmatprep.subr.mxu0 0.0
      %704 = vmatpush2.msra.mxu0 0.0
      %705 = vmatprep.subr.mxu0 0.0
      %706 = vmatpush2.msra.mxu0 0.0
      %707 = vmatprep.subr.mxu0 0.0
      %708 = vmatpush2.msra.mxu0 0.0
      %709 = vmatprep.subr.mxu0 0.0
      %710 = vmatpush2.msra.mxu0 0.0
      %711 = vmatprep.subr.mxu0 0.0
      %712 = vmatpush2.msra.mxu0 0.0
      %713 = vmatprep.subr.mxu0 0.0
      %714 = vmatpush2.msra.mxu0 0.0
      %715 = vmatprep.subr.mxu0 0.0
      %716 = vmatpush2.msra.mxu0 0.0
      %717 = vmatprep.subr.mxu0 0.0
      %718 = vmatpush2.msra.mxu0 0.0
      %719 = vmatprep.subr.mxu0 0.0
      %720 = vmatpush2.msra.mxu0 0.0
      %721 = vmatprep.mubr.f32.mxu0 0.0
      %722 = vmatmul.mubr.f32.gmra.mxu0 %v649
      %v723 = vpop.f32.mrf.mxu0
      %v724 = vadd.f32 %v644, %v723
      %v725 = vpop.f32.mrf.mxu0
      %v726 = vadd.f32 %v646, %v725
      %727 = vdwg.mxu0
      %s728 = scalar_lea.vmem %s2, 24
      %v729 = vld [vmem:[%s728] sm:$0xf]
      %v731 = vsel %vm566, %v729, 0
      %v734 = vsel %vm570, %v561, 0
      %v737 = vsel %vm570, %v562, 0
      %739 = vmatprep.subr.mxu0 0.0
      %740 = vmatpush1.msra.mxu0 0.0
      %741 = vmatprep.subr.mxu0 0.0
      %742 = vmatpush1.msra.mxu0 0.0
      %743 = vmatprep.subr.mxu0 0.0
      %744 = vmatpush1.msra.mxu0 0.0
      %745 = vmatprep.subr.mxu0 0.0
      %746 = vmatpush1.msra.mxu0 0.0
      %747 = vmatprep.subr.mxu0 0.0
      %748 = vmatpush1.msra.mxu0 0.0
      %749 = vmatprep.subr.mxu0 0.0
      %750 = vmatpush1.msra.mxu0 0.0
      %751 = vmatprep.subr.mxu0 0.0
      %752 = vmatpush1.msra.mxu0 0.0
      %753 = vmatprep.subr.mxu0 0.0
      %754 = vmatpush1.msra.mxu0 0.0
      %755 = vmatprep.subr.mxu0 0.0
      %756 = vmatpush1.msra.mxu0 0.0
      %757 = vmatprep.subr.mxu0 0.0
      %758 = vmatpush1.msra.mxu0 0.0
      %759 = vmatprep.subr.mxu0 0.0
      %760 = vmatpush1.msra.mxu0 0.0
      %761 = vmatprep.subr.mxu0 0.0
      %762 = vmatpush1.msra.mxu0 0.0
      %763 = vmatprep.subr.mxu0 0.0
      %764 = vmatpush1.msra.mxu0 0.0
      %765 = vmatprep.subr.mxu0 0.0
      %766 = vmatpush1.msra.mxu0 0.0
      %767 = vmatprep.subr.mxu0 0.0
      %768 = vmatpush1.msra.mxu0 0.0
      %769 = vmatprep.subr.mxu0 %v737
      %770 = vmatpush1.msra.mxu0 %v734
      %771 = vmatprep.subr.mxu0 0.0
      %772 = vmatpush2.msra.mxu0 0.0
      %773 = vmatprep.subr.mxu0 0.0
      %774 = vmatpush2.msra.mxu0 0.0
      %775 = vmatprep.subr.mxu0 0.0
      %776 = vmatpush2.msra.mxu0 0.0
      %777 = vmatprep.subr.mxu0 0.0
      %778 = vmatpush2.msra.mxu0 0.0
      %779 = vmatprep.subr.mxu0 0.0
      %780 = vmatpush2.msra.mxu0 0.0
      %781 = vmatprep.subr.mxu0 0.0
      %782 = vmatpush2.msra.mxu0 0.0
      %783 = vmatprep.subr.mxu0 0.0
      %784 = vmatpush2.msra.mxu0 0.0
      %785 = vmatprep.subr.mxu0 0.0
      %786 = vmatpush2.msra.mxu0 0.0
      %787 = vmatprep.subr.mxu0 0.0
      %788 = vmatpush2.msra.mxu0 0.0
      %789 = vmatprep.subr.mxu0 0.0
      %790 = vmatpush2.msra.mxu0 0.0
      %791 = vmatprep.subr.mxu0 0.0
      %792 = vmatpush2.msra.mxu0 0.0
      %793 = vmatprep.subr.mxu0 0.0
      %794 = vmatpush2.msra.mxu0 0.0
      %795 = vmatprep.subr.mxu0 0.0
      %796 = vmatpush2.msra.mxu0 0.0
      %797 = vmatprep.subr.mxu0 0.0
      %798 = vmatpush2.msra.mxu0 0.0
      %799 = vmatprep.subr.mxu0 0.0
      %800 = vmatpush2.msra.mxu0 0.0
      %801 = vmatprep.subr.mxu0 0.0
      %802 = vmatpush2.msra.mxu0 0.0
      %803 = vmatprep.mubr.f32.mxu0 0.0
      %804 = vmatmul.mubr.f32.gmra.mxu0 %v731
      %v805 = vpop.f32.mrf.mxu0
      %v806 = vadd.f32 0.0, %v805
      %v807 = vpop.f32.mrf.mxu0
      %v808 = vadd.f32 0.0, %v807
      %809 = vdwg.mxu0
      %v810 = vadd.f32 %v724, %v806
      %v811 = vadd.f32 %v726, %v808
      %812 = vrot.lane.b32.xlu0 %v521, 112
      %v813 = vpop.permute.xlu0 %812
      %814 = vrot.lane.b32.xlu0 %v523, 112
      %v815 = vpop.permute.xlu0 %814
      %v816 = vsel %vm549, %v813, %v815
      %v817 = vsel %vm549, %v815, %v813
      %818 = vrot.lane.b32.xlu0 %v521, 16
      %v819 = vpop.permute.xlu0 %818
      %820 = vrot.lane.b32.xlu0 %v523, 16
      %v821 = vpop.permute.xlu0 %820
      %v822 = vsel %vm556, %v819, %v821
      %v823 = vsel %vm556, %v821, %v819
      %v824 = vsel %vm501, %v816, %v823
      %v825 = vsel %vm502, %v817, %v822
      %v826 = vsel %vm519, %v823, %v816
      %v827 = vsel %vm520, %v822, %v817
      %s828 = scalar_lea.vmem %s2, 4
      %v829 = vld [vmem:[%s828] sm:$0xf]
      %v831 = vsel %vm566, %v829, 0
      %v834 = vsel %vm570, %v824, 0
      %v837 = vsel %vm570, %v825, 0
      %839 = vmatprep.subr.mxu0 0.0
      %840 = vmatpush1.msra.mxu0 0.0
      %841 = vmatprep.subr.mxu0 0.0
      %842 = vmatpush1.msra.mxu0 0.0
      %843 = vmatprep.subr.mxu0 0.0
      %844 = vmatpush1.msra.mxu0 0.0
      %845 = vmatprep.subr.mxu0 0.0
      %846 = vmatpush1.msra.mxu0 0.0
      %847 = vmatprep.subr.mxu0 0.0
      %848 = vmatpush1.msra.mxu0 0.0
      %849 = vmatprep.subr.mxu0 0.0
      %850 = vmatpush1.msra.mxu0 0.0
      %851 = vmatprep.subr.mxu0 0.0
      %852 = vmatpush1.msra.mxu0 0.0
      %853 = vmatprep.subr.mxu0 0.0
      %854 = vmatpush1.msra.mxu0 0.0
      %855 = vmatprep.subr.mxu0 0.0
      %856 = vmatpush1.msra.mxu0 0.0
      %857 = vmatprep.subr.mxu0 0.0
      %858 = vmatpush1.msra.mxu0 0.0
      %859 = vmatprep.subr.mxu0 0.0
      %860 = vmatpush1.msra.mxu0 0.0
      %861 = vmatprep.subr.mxu0 0.0
      %862 = vmatpush1.msra.mxu0 0.0
      %863 = vmatprep.subr.mxu0 0.0
      %864 = vmatpush1.msra.mxu0 0.0
      %865 = vmatprep.subr.mxu0 0.0
      %866 = vmatpush1.msra.mxu0 0.0
      %867 = vmatprep.subr.mxu0 0.0
      %868 = vmatpush1.msra.mxu0 0.0
      %869 = vmatprep.subr.mxu0 %v837
      %870 = vmatpush1.msra.mxu0 %v834
      %871 = vmatprep.subr.mxu0 0.0
      %872 = vmatpush2.msra.mxu0 0.0
      %873 = vmatprep.subr.mxu0 0.0
      %874 = vmatpush2.msra.mxu0 0.0
      %875 = vmatprep.subr.mxu0 0.0
      %876 = vmatpush2.msra.mxu0 0.0
      %877 = vmatprep.subr.mxu0 0.0
      %878 = vmatpush2.msra.mxu0 0.0
      %879 = vmatprep.subr.mxu0 0.0
      %880 = vmatpush2.msra.mxu0 0.0
      %881 = vmatprep.subr.mxu0 0.0
      %882 = vmatpush2.msra.mxu0 0.0
      %883 = vmatprep.subr.mxu0 0.0
      %884 = vmatpush2.msra.mxu0 0.0
      %885 = vmatprep.subr.mxu0 0.0
      %886 = vmatpush2.msra.mxu0 0.0
      %887 = vmatprep.subr.mxu0 0.0
      %888 = vmatpush2.msra.mxu0 0.0
      %889 = vmatprep.subr.mxu0 0.0
      %890 = vmatpush2.msra.mxu0 0.0
      %891 = vmatprep.subr.mxu0 0.0
      %892 = vmatpush2.msra.mxu0 0.0
      %893 = vmatprep.subr.mxu0 0.0
      %894 = vmatpush2.msra.mxu0 0.0
      %895 = vmatprep.subr.mxu0 0.0
      %896 = vmatpush2.msra.mxu0 0.0
      %897 = vmatprep.subr.mxu0 0.0
      %898 = vmatpush2.msra.mxu0 0.0
      %899 = vmatprep.subr.mxu0 0.0
      %900 = vmatpush2.msra.mxu0 0.0
      %901 = vmatprep.subr.mxu0 0.0
      %902 = vmatpush2.msra.mxu0 0.0
      %903 = vmatprep.mubr.f32.mxu0 0.0
      %904 = vmatmul.mubr.f32.gmra.mxu0 %v831
      %v905 = vpop.f32.mrf.mxu0
      %v906 = vadd.f32 0.0, %v905
      %v907 = vpop.f32.mrf.mxu0
      %v908 = vadd.f32 0.0, %v907
      %909 = vdwg.mxu0
      %v910 = vadd.f32 %v810, %v906
      %v911 = vadd.f32 %v811, %v908
      %s912 = scalar_lea.vmem %s2, 16
      %v913 = vld [vmem:[%s912] sm:$0xf]
      %v915 = vsel %vm566, %v913, 0
      %v917 = vsel %vm570, %v521, 0
      %v919 = vsel %vm570, %v523, 0
      %921 = vmatprep.subr.mxu0 0.0
      %922 = vmatpush1.msra.mxu0 0.0
      %923 = vmatprep.subr.mxu0 0.0
      %924 = vmatpush1.msra.mxu0 0.0
      %925 = vmatprep.subr.mxu0 0.0
      %926 = vmatpush1.msra.mxu0 0.0
      %927 = vmatprep.subr.mxu0 0.0
      %928 = vmatpush1.msra.mxu0 0.0
      %929 = vmatprep.subr.mxu0 0.0
      %930 = vmatpush1.msra.mxu0 0.0
      %931 = vmatprep.subr.mxu0 0.0
      %932 = vmatpush1.msra.mxu0 0.0
      %933 = vmatprep.subr.mxu0 0.0
      %934 = vmatpush1.msra.mxu0 0.0
      %935 = vmatprep.subr.mxu0 0.0
      %936 = vmatpush1.msra.mxu0 0.0
      %937 = vmatprep.subr.mxu0 0.0
      %938 = vmatpush1.msra.mxu0 0.0
      %939 = vmatprep.subr.mxu0 0.0
      %940 = vmatpush1.msra.mxu0 0.0
      %941 = vmatprep.subr.mxu0 0.0
      %942 = vmatpush1.msra.mxu0 0.0
      %943 = vmatprep.subr.mxu0 0.0
      %944 = vmatpush1.msra.mxu0 0.0
      %945 = vmatprep.subr.mxu0 0.0
      %946 = vmatpush1.msra.mxu0 0.0
      %947 = vmatprep.subr.mxu0 0.0
      %948 = vmatpush1.msra.mxu0 0.0
      %949 = vmatprep.subr.mxu0 0.0
      %950 = vmatpush1.msra.mxu0 0.0
      %951 = vmatprep.subr.mxu0 %v919
      %952 = vmatpush1.msra.mxu0 %v917
      %953 = vmatprep.subr.mxu0 0.0
      %954 = vmatpush2.msra.mxu0 0.0
      %955 = vmatprep.subr.mxu0 0.0
      %956 = vmatpush2.msra.mxu0 0.0
      %957 = vmatprep.subr.mxu0 0.0
      %958 = vmatpush2.msra.mxu0 0.0
      %959 = vmatprep.subr.mxu0 0.0
      %960 = vmatpush2.msra.mxu0 0.0
      %961 = vmatprep.subr.mxu0 0.0
      %962 = vmatpush2.msra.mxu0 0.0
      %963 = vmatprep.subr.mxu0 0.0
      %964 = vmatpush2.msra.mxu0 0.0
      %965 = vmatprep.subr.mxu0 0.0
      %966 = vmatpush2.msra.mxu0 0.0
      %967 = vmatprep.subr.mxu0 0.0
      %968 = vmatpush2.msra.mxu0 0.0
      %969 = vmatprep.subr.mxu0 0.0
      %970 = vmatpush2.msra.mxu0 0.0
      %971 = vmatprep.subr.mxu0 0.0
      %972 = vmatpush2.msra.mxu0 0.0
      %973 = vmatprep.subr.mxu0 0.0
      %974 = vmatpush2.msra.mxu0 0.0
      %975 = vmatprep.subr.mxu0 0.0
      %976 = vmatpush2.msra.mxu0 0.0
      %977 = vmatprep.subr.mxu0 0.0
      %978 = vmatpush2.msra.mxu0 0.0
      %979 = vmatprep.subr.mxu0 0.0
      %980 = vmatpush2.msra.mxu0 0.0
      %981 = vmatprep.subr.mxu0 0.0
      %982 = vmatpush2.msra.mxu0 0.0
      %983 = vmatprep.subr.mxu0 0.0
      %984 = vmatpush2.msra.mxu0 0.0
      %985 = vmatprep.mubr.f32.mxu0 0.0
      %986 = vmatmul.mubr.f32.gmra.mxu0 %v915
      %v987 = vpop.f32.mrf.mxu0
      %v988 = vadd.f32 0.0, %v987
      %v989 = vpop.f32.mrf.mxu0
      %v990 = vadd.f32 0.0, %v989
      %991 = vdwg.mxu0
      %v992 = vadd.f32 %v910, %v988
      %v993 = vadd.f32 %v911, %v990
      %s994 = scalar_lea.vmem %s2, 28
      %v995 = vld [vmem:[%s994] sm:$0xf]
      %v997 = vsel %vm566, %v995, 0
      %v1000 = vsel %vm570, %v826, 0
      %v1003 = vsel %vm570, %v827, 0
      %1005 = vmatprep.subr.mxu0 0.0
      %1006 = vmatpush1.msra.mxu0 0.0
      %1007 = vmatprep.subr.mxu0 0.0
      %1008 = vmatpush1.msra.mxu0 0.0
      %1009 = vmatprep.subr.mxu0 0.0
      %1010 = vmatpush1.msra.mxu0 0.0
      %1011 = vmatprep.subr.mxu0 0.0
      %1012 = vmatpush1.msra.mxu0 0.0
      %1013 = vmatprep.subr.mxu0 0.0
      %1014 = vmatpush1.msra.mxu0 0.0
      %1015 = vmatprep.subr.mxu0 0.0
      %1016 = vmatpush1.msra.mxu0 0.0
      %1017 = vmatprep.subr.mxu0 0.0
      %1018 = vmatpush1.msra.mxu0 0.0
      %1019 = vmatprep.subr.mxu0 0.0
      %1020 = vmatpush1.msra.mxu0 0.0
      %1021 = vmatprep.subr.mxu0 0.0
      %1022 = vmatpush1.msra.mxu0 0.0
      %1023 = vmatprep.subr.mxu0 0.0
      %1024 = vmatpush1.msra.mxu0 0.0
      %1025 = vmatprep.subr.mxu0 0.0
      %1026 = vmatpush1.msra.mxu0 0.0
      %1027 = vmatprep.subr.mxu0 0.0
      %1028 = vmatpush1.msra.mxu0 0.0
      %1029 = vmatprep.subr.mxu0 0.0
      %1030 = vmatpush1.msra.mxu0 0.0
      %1031 = vmatprep.subr.mxu0 0.0
      %1032 = vmatpush1.msra.mxu0 0.0
      %1033 = vmatprep.subr.mxu0 0.0
      %1034 = vmatpush1.msra.mxu0 0.0
      %1035 = vmatprep.subr.mxu0 %v1003
      %1036 = vmatpush1.msra.mxu0 %v1000
      %1037 = vmatprep.subr.mxu0 0.0
      %1038 = vmatpush2.msra.mxu0 0.0
      %1039 = vmatprep.subr.mxu0 0.0
      %1040 = vmatpush2.msra.mxu0 0.0
      %1041 = vmatprep.subr.mxu0 0.0
      %1042 = vmatpush2.msra.mxu0 0.0
      %1043 = vmatprep.subr.mxu0 0.0
      %1044 = vmatpush2.msra.mxu0 0.0
      %1045 = vmatprep.subr.mxu0 0.0
      %1046 = vmatpush2.msra.mxu0 0.0
      %1047 = vmatprep.subr.mxu0 0.0
      %1048 = vmatpush2.msra.mxu0 0.0
      %1049 = vmatprep.subr.mxu0 0.0
      %1050 = vmatpush2.msra.mxu0 0.0
      %1051 = vmatprep.subr.mxu0 0.0
      %1052 = vmatpush2.msra.mxu0 0.0
      %1053 = vmatprep.subr.mxu0 0.0
      %1054 = vmatpush2.msra.mxu0 0.0
      %1055 = vmatprep.subr.mxu0 0.0
      %1056 = vmatpush2.msra.mxu0 0.0
      %1057 = vmatprep.subr.mxu0 0.0
      %1058 = vmatpush2.msra.mxu0 0.0
      %1059 = vmatprep.subr.mxu0 0.0
      %1060 = vmatpush2.msra.mxu0 0.0
      %1061 = vmatprep.subr.mxu0 0.0
      %1062 = vmatpush2.msra.mxu0 0.0
      %1063 = vmatprep.subr.mxu0 0.0
      %1064 = vmatpush2.msra.mxu0 0.0
      %1065 = vmatprep.subr.mxu0 0.0
      %1066 = vmatpush2.msra.mxu0 0.0
      %1067 = vmatprep.subr.mxu0 0.0
      %1068 = vmatpush2.msra.mxu0 0.0
      %1069 = vmatprep.mubr.f32.mxu0 0.0
      %1070 = vmatmul.mubr.f32.gmra.mxu0 %v997
      %v1071 = vpop.f32.mrf.mxu0
      %v1072 = vadd.f32 0.0, %v1071
      %v1073 = vpop.f32.mrf.mxu0
      %v1074 = vadd.f32 0.0, %v1073
      %1075 = vdwg.mxu0
      %v1076 = vadd.f32 %v992, %v1072
      %v1077 = vadd.f32 %v993, %v1074
      %1078 = vrot.lane.b32.xlu0 %v543, 112
      %v1079 = vpop.permute.xlu0 %1078
      %1080 = vrot.lane.b32.xlu0 %v544, 112
      %v1081 = vpop.permute.xlu0 %1080
      %v1082 = vsel %vm549, %v1079, %v1081
      %v1083 = vsel %vm549, %v1081, %v1079
      %1084 = vrot.lane.b32.xlu0 %v543, 16
      %v1085 = vpop.permute.xlu0 %1084
      %1086 = vrot.lane.b32.xlu0 %v544, 16
      %v1087 = vpop.permute.xlu0 %1086
      %v1088 = vsel %vm556, %v1085, %v1087
      %v1089 = vsel %vm556, %v1087, %v1085
      %v1090 = vsel %vm501, %v1082, %v1089
      %v1091 = vsel %vm502, %v1083, %v1088
      %v1092 = vsel %vm519, %v1089, %v1082
      %v1093 = vsel %vm520, %v1088, %v1083
      %s1094 = scalar_lea.vmem %s2, 8
      %v1095 = vld [vmem:[%s1094] sm:$0xf]
      %v1097 = vsel %vm566, %v1095, 0
      %v1100 = vsel %vm570, %v1090, 0
      %v1103 = vsel %vm570, %v1091, 0
      %1105 = vmatprep.subr.mxu0 0.0
      %1106 = vmatpush1.msra.mxu0 0.0
      %1107 = vmatprep.subr.mxu0 0.0
      %1108 = vmatpush1.msra.mxu0 0.0
      %1109 = vmatprep.subr.mxu0 0.0
      %1110 = vmatpush1.msra.mxu0 0.0
      %1111 = vmatprep.subr.mxu0 0.0
      %1112 = vmatpush1.msra.mxu0 0.0
      %1113 = vmatprep.subr.mxu0 0.0
      %1114 = vmatpush1.msra.mxu0 0.0
      %1115 = vmatprep.subr.mxu0 0.0
      %1116 = vmatpush1.msra.mxu0 0.0
      %1117 = vmatprep.subr.mxu0 0.0
      %1118 = vmatpush1.msra.mxu0 0.0
      %1119 = vmatprep.subr.mxu0 0.0
      %1120 = vmatpush1.msra.mxu0 0.0
      %1121 = vmatprep.subr.mxu0 0.0
      %1122 = vmatpush1.msra.mxu0 0.0
      %1123 = vmatprep.subr.mxu0 0.0
      %1124 = vmatpush1.msra.mxu0 0.0
      %1125 = vmatprep.subr.mxu0 0.0
      %1126 = vmatpush1.msra.mxu0 0.0
      %1127 = vmatprep.subr.mxu0 0.0
      %1128 = vmatpush1.msra.mxu0 0.0
      %1129 = vmatprep.subr.mxu0 0.0
      %1130 = vmatpush1.msra.mxu0 0.0
      %1131 = vmatprep.subr.mxu0 0.0
      %1132 = vmatpush1.msra.mxu0 0.0
      %1133 = vmatprep.subr.mxu0 0.0
      %1134 = vmatpush1.msra.mxu0 0.0
      %1135 = vmatprep.subr.mxu0 %v1103
      %1136 = vmatpush1.msra.mxu0 %v1100
      %1137 = vmatprep.subr.mxu0 0.0
      %1138 = vmatpush2.msra.mxu0 0.0
      %1139 = vmatprep.subr.mxu0 0.0
      %1140 = vmatpush2.msra.mxu0 0.0
      %1141 = vmatprep.subr.mxu0 0.0
      %1142 = vmatpush2.msra.mxu0 0.0
      %1143 = vmatprep.subr.mxu0 0.0
      %1144 = vmatpush2.msra.mxu0 0.0
      %1145 = vmatprep.subr.mxu0 0.0
      %1146 = vmatpush2.msra.mxu0 0.0
      %1147 = vmatprep.subr.mxu0 0.0
      %1148 = vmatpush2.msra.mxu0 0.0
      %1149 = vmatprep.subr.mxu0 0.0
      %1150 = vmatpush2.msra.mxu0 0.0
      %1151 = vmatprep.subr.mxu0 0.0
      %1152 = vmatpush2.msra.mxu0 0.0
      %1153 = vmatprep.subr.mxu0 0.0
      %1154 = vmatpush2.msra.mxu0 0.0
      %1155 = vmatprep.subr.mxu0 0.0
      %1156 = vmatpush2.msra.mxu0 0.0
      %1157 = vmatprep.subr.mxu0 0.0
      %1158 = vmatpush2.msra.mxu0 0.0
      %1159 = vmatprep.subr.mxu0 0.0
      %1160 = vmatpush2.msra.mxu0 0.0
      %1161 = vmatprep.subr.mxu0 0.0
      %1162 = vmatpush2.msra.mxu0 0.0
      %1163 = vmatprep.subr.mxu0 0.0
      %1164 = vmatpush2.msra.mxu0 0.0
      %1165 = vmatprep.subr.mxu0 0.0
      %1166 = vmatpush2.msra.mxu0 0.0
      %1167 = vmatprep.subr.mxu0 0.0
      %1168 = vmatpush2.msra.mxu0 0.0
      %1169 = vmatprep.mubr.f32.mxu0 0.0
      %1170 = vmatmul.mubr.f32.gmra.mxu0 %v1097
      %v1171 = vpop.f32.mrf.mxu0
      %v1172 = vadd.f32 0.0, %v1171
      %v1173 = vpop.f32.mrf.mxu0
      %v1174 = vadd.f32 0.0, %v1173
      %1175 = vdwg.mxu0
      %v1176 = vadd.f32 %v1076, %v1172
      %v1177 = vadd.f32 %v1077, %v1174
      %s1178 = scalar_lea.vmem %s2, 20
      %v1179 = vld [vmem:[%s1178] sm:$0xf]
      %v1181 = vsel %vm566, %v1179, 0
      %v1184 = vsel %vm570, %v543, 0
      %v1187 = vsel %vm570, %v544, 0
      %1189 = vmatprep.subr.mxu0 0.0
      %1190 = vmatpush1.msra.mxu0 0.0
      %1191 = vmatprep.subr.mxu0 0.0
      %1192 = vmatpush1.msra.mxu0 0.0
      %1193 = vmatprep.subr.mxu0 0.0
      %1194 = vmatpush1.msra.mxu0 0.0
      %1195 = vmatprep.subr.mxu0 0.0
      %1196 = vmatpush1.msra.mxu0 0.0
      %1197 = vmatprep.subr.mxu0 0.0
      %1198 = vmatpush1.msra.mxu0 0.0
      %1199 = vmatprep.subr.mxu0 0.0
      %1200 = vmatpush1.msra.mxu0 0.0
      %1201 = vmatprep.subr.mxu0 0.0
      %1202 = vmatpush1.msra.mxu0 0.0
      %1203 = vmatprep.subr.mxu0 0.0
      %1204 = vmatpush1.msra.mxu0 0.0
      %1205 = vmatprep.subr.mxu0 0.0
      %1206 = vmatpush1.msra.mxu0 0.0
      %1207 = vmatprep.subr.mxu0 0.0
      %1208 = vmatpush1.msra.mxu0 0.0
      %1209 = vmatprep.subr.mxu0 0.0
      %1210 = vmatpush1.msra.mxu0 0.0
      %1211 = vmatprep.subr.mxu0 0.0
      %1212 = vmatpush1.msra.mxu0 0.0
      %1213 = vmatprep.subr.mxu0 0.0
      %1214 = vmatpush1.msra.mxu0 0.0
      %1215 = vmatprep.subr.mxu0 0.0
      %1216 = vmatpush1.msra.mxu0 0.0
      %1217 = vmatprep.subr.mxu0 0.0
      %1218 = vmatpush1.msra.mxu0 0.0
      %1219 = vmatprep.subr.mxu0 %v1187
      %1220 = vmatpush1.msra.mxu0 %v1184
      %1221 = vmatprep.subr.mxu0 0.0
      %1222 = vmatpush2.msra.mxu0 0.0
      %1223 = vmatprep.subr.mxu0 0.0
      %1224 = vmatpush2.msra.mxu0 0.0
      %1225 = vmatprep.subr.mxu0 0.0
      %1226 = vmatpush2.msra.mxu0 0.0
      %1227 = vmatprep.subr.mxu0 0.0
      %1228 = vmatpush2.msra.mxu0 0.0
      %1229 = vmatprep.subr.mxu0 0.0
      %1230 = vmatpush2.msra.mxu0 0.0
      %1231 = vmatprep.subr.mxu0 0.0
      %1232 = vmatpush2.msra.mxu0 0.0
      %1233 = vmatprep.subr.mxu0 0.0
      %1234 = vmatpush2.msra.mxu0 0.0
      %1235 = vmatprep.subr.mxu0 0.0
      %1236 = vmatpush2.msra.mxu0 0.0
      %1237 = vmatprep.subr.mxu0 0.0
      %1238 = vmatpush2.msra.mxu0 0.0
      %1239 = vmatprep.subr.mxu0 0.0
      %1240 = vmatpush2.msra.mxu0 0.0
      %1241 = vmatprep.subr.mxu0 0.0
      %1242 = vmatpush2.msra.mxu0 0.0
      %1243 = vmatprep.subr.mxu0 0.0
      %1244 = vmatpush2.msra.mxu0 0.0
      %1245 = vmatprep.subr.mxu0 0.0
      %1246 = vmatpush2.msra.mxu0 0.0
      %1247 = vmatprep.subr.mxu0 0.0
      %1248 = vmatpush2.msra.mxu0 0.0
      %1249 = vmatprep.subr.mxu0 0.0
      %1250 = vmatpush2.msra.mxu0 0.0
      %1251 = vmatprep.subr.mxu0 0.0
      %1252 = vmatpush2.msra.mxu0 0.0
      %1253 = vmatprep.mubr.f32.mxu0 0.0
      %1254 = vmatmul.mubr.f32.gmra.mxu0 %v1181
      %v1255 = vpop.f32.mrf.mxu0
      %v1256 = vadd.f32 0.0, %v1255
      %v1257 = vpop.f32.mrf.mxu0
      %v1258 = vadd.f32 0.0, %v1257
      %1259 = vdwg.mxu0
      %v1260 = vadd.f32 %v1176, %v1256
      %v1261 = vadd.f32 %v1177, %v1258
      %s1262 = scalar_lea.vmem %s2, 32
      %v1263 = vld [vmem:[%s1262] sm:$0xf]
      %v1265 = vsel %vm566, %v1263, 0
      %v1268 = vsel %vm570, %v1092, 0
      %v1271 = vsel %vm570, %v1093, 0
      %1273 = vmatprep.subr.mxu0 0.0
      %1274 = vmatpush1.msra.mxu0 0.0
      %1275 = vmatprep.subr.mxu0 0.0
      %1276 = vmatpush1.msra.mxu0 0.0
      %1277 = vmatprep.subr.mxu0 0.0
      %1278 = vmatpush1.msra.mxu0 0.0
      %1279 = vmatprep.subr.mxu0 0.0
      %1280 = vmatpush1.msra.mxu0 0.0
      %1281 = vmatprep.subr.mxu0 0.0
      %1282 = vmatpush1.msra.mxu0 0.0
      %1283 = vmatprep.subr.mxu0 0.0
      %1284 = vmatpush1.msra.mxu0 0.0
      %1285 = vmatprep.subr.mxu0 0.0
      %1286 = vmatpush1.msra.mxu0 0.0
      %1287 = vmatprep.subr.mxu0 0.0
      %1288 = vmatpush1.msra.mxu0 0.0
      %1289 = vmatprep.subr.mxu0 0.0
      %1290 = vmatpush1.msra.mxu0 0.0
      %1291 = vmatprep.subr.mxu0 0.0
      %1292 = vmatpush1.msra.mxu0 0.0
      %1293 = vmatprep.subr.mxu0 0.0
      %1294 = vmatpush1.msra.mxu0 0.0
      %1295 = vmatprep.subr.mxu0 0.0
      %1296 = vmatpush1.msra.mxu0 0.0
      %1297 = vmatprep.subr.mxu0 0.0
      %1298 = vmatpush1.msra.mxu0 0.0
      %1299 = vmatprep.subr.mxu0 0.0
      %1300 = vmatpush1.msra.mxu0 0.0
      %1301 = vmatprep.subr.mxu0 0.0
      %1302 = vmatpush1.msra.mxu0 0.0
      %1303 = vmatprep.subr.mxu0 %v1271
      %1304 = vmatpush1.msra.mxu0 %v1268
      %1305 = vmatprep.subr.mxu0 0.0
      %1306 = vmatpush2.msra.mxu0 0.0
      %1307 = vmatprep.subr.mxu0 0.0
      %1308 = vmatpush2.msra.mxu0 0.0
      %1309 = vmatprep.subr.mxu0 0.0
      %1310 = vmatpush2.msra.mxu0 0.0
      %1311 = vmatprep.subr.mxu0 0.0
      %1312 = vmatpush2.msra.mxu0 0.0
      %1313 = vmatprep.subr.mxu0 0.0
      %1314 = vmatpush2.msra.mxu0 0.0
      %1315 = vmatprep.subr.mxu0 0.0
      %1316 = vmatpush2.msra.mxu0 0.0
      %1317 = vmatprep.subr.mxu0 0.0
      %1318 = vmatpush2.msra.mxu0 0.0
      %1319 = vmatprep.subr.mxu0 0.0
      %1320 = vmatpush2.msra.mxu0 0.0
      %1321 = vmatprep.subr.mxu0 0.0
      %1322 = vmatpush2.msra.mxu0 0.0
      %1323 = vmatprep.subr.mxu0 0.0
      %1324 = vmatpush2.msra.mxu0 0.0
      %1325 = vmatprep.subr.mxu0 0.0
      %1326 = vmatpush2.msra.mxu0 0.0
      %1327 = vmatprep.subr.mxu0 0.0
      %1328 = vmatpush2.msra.mxu0 0.0
      %1329 = vmatprep.subr.mxu0 0.0
      %1330 = vmatpush2.msra.mxu0 0.0
      %1331 = vmatprep.subr.mxu0 0.0
      %1332 = vmatpush2.msra.mxu0 0.0
      %1333 = vmatprep.subr.mxu0 0.0
      %1334 = vmatpush2.msra.mxu0 0.0
      %1335 = vmatprep.subr.mxu0 0.0
      %1336 = vmatpush2.msra.mxu0 0.0
      %1337 = vmatprep.mubr.f32.mxu0 0.0
      %1338 = vmatmul.mubr.f32.gmra.mxu0 %v1265
      %v1339 = vpop.f32.mrf.mxu0
      %v1340 = vadd.f32 0.0, %v1339
      %v1341 = vpop.f32.mrf.mxu0
      %v1342 = vadd.f32 0.0, %v1341
      %1343 = vdwg.mxu0
      %v1344 = vadd.f32 %v1260, %v1340
      %v1345 = vadd.f32 %v1261, %v1342
      %v1346 = vsel %vm570, %v1344, 0.0
      %v1347 = vsel %vm570, %v1345, 0.0
      %v1348 = vadd.f32 %v1346, %v1347
      %1349 = vadd.xlane.f32.xlu0 %v1348
      %v1350 = vpop.xlane.xlu0 %1349
      %v1351 = vmul.f32 %v1350, 0.00390625
      %v1352 = vsub.f32 %v1344, %v1351
      %v1353 = vsub.f32 %v1345, %v1351
      %v1354 = vmul.f32 %v1352, %v1352
      %v1355 = vmul.f32 %v1353, %v1353
      %v1356 = vsel %vm570, %v1354, 0.0
      %v1357 = vsel %vm570, %v1355, 0.0
      %v1358 = vadd.f32 %v1356, %v1357
      %1359 = vadd.xlane.f32.xlu0 %v1358
      %v1360 = vpop.xlane.xlu0 %1359
      %v1361 = vmul.f32 %v1360, 0.00390625
      %v1362 = vadd.f32 %v1361, 1e-05
      %v1363 = vrsqrt.pop %v1362
      %v1364 = vmul.f32 %v1352, %v1363
      %v1365 = vmul.f32 %v1353, %v1363
      %v1366 = vld [vmem:[%s4] sm:$0xff]
      %v1367 = vld [vmem:[%s438] sm:$0xff]
      %1369 = vset.pattern.permute.xlu0 0
      %1370 = vperm.xlu0 %1369, %v1367
      %v1371 = vpop.permute.xlu0 %1370
      %v1374 = vsel %vm566, %v1366, 0
      %v1377 = vsel %vm570, %v1364, 0
      %v1380 = vsel %vm570, %v1365, 0
      %1382 = vmatprep.subr.mxu0 0.0
      %1383 = vmatpush1.msra.mxu0 0.0
      %1384 = vmatprep.subr.mxu0 0.0
      %1385 = vmatpush1.msra.mxu0 0.0
      %1386 = vmatprep.subr.mxu0 0.0
      %1387 = vmatpush1.msra.mxu0 0.0
      %1388 = vmatprep.subr.mxu0 0.0
      %1389 = vmatpush1.msra.mxu0 0.0
      %1390 = vmatprep.subr.mxu0 0.0
      %1391 = vmatpush1.msra.mxu0 0.0
      %1392 = vmatprep.subr.mxu0 0.0
      %1393 = vmatpush1.msra.mxu0 0.0
      %1394 = vmatprep.subr.mxu0 0.0
      %1395 = vmatpush1.msra.mxu0 0.0
      %1396 = vmatprep.subr.mxu0 0.0
      %1397 = vmatpush1.msra.mxu0 0.0
      %1398 = vmatprep.subr.mxu0 0.0
      %1399 = vmatpush1.msra.mxu0 0.0
      %1400 = vmatprep.subr.mxu0 0.0
      %1401 = vmatpush1.msra.mxu0 0.0
      %1402 = vmatprep.subr.mxu0 0.0
      %1403 = vmatpush1.msra.mxu0 0.0
      %1404 = vmatprep.subr.mxu0 0.0
      %1405 = vmatpush1.msra.mxu0 0.0
      %1406 = vmatprep.subr.mxu0 0.0
      %1407 = vmatpush1.msra.mxu0 0.0
      %1408 = vmatprep.subr.mxu0 0.0
      %1409 = vmatpush1.msra.mxu0 0.0
      %1410 = vmatprep.subr.mxu0 0.0
      %1411 = vmatpush1.msra.mxu0 0.0
      %1412 = vmatprep.subr.mxu0 %v1380
      %1413 = vmatpush1.msra.mxu0 %v1377
      %1414 = vmatprep.subr.mxu0 0.0
      %1415 = vmatpush2.msra.mxu0 0.0
      %1416 = vmatprep.subr.mxu0 0.0
      %1417 = vmatpush2.msra.mxu0 0.0
      %1418 = vmatprep.subr.mxu0 0.0
      %1419 = vmatpush2.msra.mxu0 0.0
      %1420 = vmatprep.subr.mxu0 0.0
      %1421 = vmatpush2.msra.mxu0 0.0
      %1422 = vmatprep.subr.mxu0 0.0
      %1423 = vmatpush2.msra.mxu0 0.0
      %1424 = vmatprep.subr.mxu0 0.0
      %1425 = vmatpush2.msra.mxu0 0.0
      %1426 = vmatprep.subr.mxu0 0.0
      %1427 = vmatpush2.msra.mxu0 0.0
      %1428 = vmatprep.subr.mxu0 0.0
      %1429 = vmatpush2.msra.mxu0 0.0
      %1430 = vmatprep.subr.mxu0 0.0
      %1431 = vmatpush2.msra.mxu0 0.0
      %1432 = vmatprep.subr.mxu0 0.0
      %1433 = vmatpush2.msra.mxu0 0.0
      %1434 = vmatprep.subr.mxu0 0.0
      %1435 = vmatpush2.msra.mxu0 0.0
      %1436 = vmatprep.subr.mxu0 0.0
      %1437 = vmatpush2.msra.mxu0 0.0
      %1438 = vmatprep.subr.mxu0 0.0
      %1439 = vmatpush2.msra.mxu0 0.0
      %1440 = vmatprep.subr.mxu0 0.0
      %1441 = vmatpush2.msra.mxu0 0.0
      %1442 = vmatprep.subr.mxu0 0.0
      %1443 = vmatpush2.msra.mxu0 0.0
      %1444 = vmatprep.subr.mxu0 0.0
      %1445 = vmatpush2.msra.mxu0 0.0
      %1446 = vmatprep.mubr.f32.mxu0 0.0
      %1447 = vmatmul.mubr.f32.gmra.mxu0 %v1374
      %v1448 = vpop.f32.mrf.mxu0
      %v1449 = vadd.f32 %v1371, %v1448
      %v1450 = vpop.f32.mrf.mxu0
      %v1451 = vadd.f32 %v1371, %v1450
      %1452 = vdwg.mxu0
      %v1453 = vmax.f32 %v1449, 0.0
      %v1454 = vmax.f32 %v1451, 0.0
      %v1455 = vld [vmem:[%s5] sm:$0xf]
      %v1456 = vld [vmem:[%s6] sm:$0xf]
      %1458 = vset.pattern.permute.xlu0 0
      %1459 = vperm.xlu0 %1458, %v1456
      %v1460 = vpop.permute.xlu0 %1459
      %vm1462 = vcmask 64512
      %v1464 = vsel %vm1462, %v1455, 0
      %1466 = vmatprep.subr.mxu0 0.0
      %1467 = vmatpush1.msra.mxu0 0.0
      %1468 = vmatprep.subr.mxu0 0.0
      %1469 = vmatpush1.msra.mxu0 0.0
      %1470 = vmatprep.subr.mxu0 0.0
      %1471 = vmatpush1.msra.mxu0 0.0
      %1472 = vmatprep.subr.mxu0 0.0
      %1473 = vmatpush1.msra.mxu0 0.0
      %1474 = vmatprep.subr.mxu0 0.0
      %1475 = vmatpush1.msra.mxu0 0.0
      %1476 = vmatprep.subr.mxu0 0.0
      %1477 = vmatpush1.msra.mxu0 0.0
      %1478 = vmatprep.subr.mxu0 0.0
      %1479 = vmatpush1.msra.mxu0 0.0
      %1480 = vmatprep.subr.mxu0 0.0
      %1481 = vmatpush1.msra.mxu0 0.0
      %1482 = vmatprep.subr.mxu0 0.0
      %1483 = vmatpush1.msra.mxu0 0.0
      %1484 = vmatprep.subr.mxu0 0.0
      %1485 = vmatpush1.msra.mxu0 0.0
      %1486 = vmatprep.subr.mxu0 0.0
      %1487 = vmatpush1.msra.mxu0 0.0
      %1488 = vmatprep.subr.mxu0 0.0
      %1489 = vmatpush1.msra.mxu0 0.0
      %1490 = vmatprep.subr.mxu0 0.0
      %1491 = vmatpush1.msra.mxu0 0.0
      %1492 = vmatprep.subr.mxu0 0.0
      %1493 = vmatpush1.msra.mxu0 0.0
      %1494 = vmatprep.subr.mxu0 0.0
      %1495 = vmatpush1.msra.mxu0 0.0
      %1496 = vmatprep.subr.mxu0 %v1454
      %1497 = vmatpush1.msra.mxu0 %v1453
      %1498 = vmatprep.subr.mxu0 0.0
      %1499 = vmatpush2.msra.mxu0 0.0
      %1500 = vmatprep.subr.mxu0 0.0
      %1501 = vmatpush2.msra.mxu0 0.0
      %1502 = vmatprep.subr.mxu0 0.0
      %1503 = vmatpush2.msra.mxu0 0.0
      %1504 = vmatprep.subr.mxu0 0.0
      %1505 = vmatpush2.msra.mxu0 0.0
      %1506 = vmatprep.subr.mxu0 0.0
      %1507 = vmatpush2.msra.mxu0 0.0
      %1508 = vmatprep.subr.mxu0 0.0
      %1509 = vmatpush2.msra.mxu0 0.0
      %1510 = vmatprep.subr.mxu0 0.0
      %1511 = vmatpush2.msra.mxu0 0.0
      %1512 = vmatprep.subr.mxu0 0.0
      %1513 = vmatpush2.msra.mxu0 0.0
      %1514 = vmatprep.subr.mxu0 0.0
      %1515 = vmatpush2.msra.mxu0 0.0
      %1516 = vmatprep.subr.mxu0 0.0
      %1517 = vmatpush2.msra.mxu0 0.0
      %1518 = vmatprep.subr.mxu0 0.0
      %1519 = vmatpush2.msra.mxu0 0.0
      %1520 = vmatprep.subr.mxu0 0.0
      %1521 = vmatpush2.msra.mxu0 0.0
      %1522 = vmatprep.subr.mxu0 0.0
      %1523 = vmatpush2.msra.mxu0 0.0
      %1524 = vmatprep.subr.mxu0 0.0
      %1525 = vmatpush2.msra.mxu0 0.0
      %1526 = vmatprep.subr.mxu0 0.0
      %1527 = vmatpush2.msra.mxu0 0.0
      %1528 = vmatprep.subr.mxu0 0.0
      %1529 = vmatpush2.msra.mxu0 0.0
      %1530 = vmatprep.mubr.f32.mxu0 0.0
      %1531 = vmatmul.mubr.f32.gmra.mxu0 %v1464
      %v1532 = vpop.f32.mrf.mxu0
      %v1533 = vadd.f32 %v1460, %v1532
      %v1534 = vpop.f32.mrf.mxu0
      %v1535 = vadd.f32 %v1460, %v1534
      %1536 = vdwg.mxu0
      %v1537 = vmax.f32 %v1533, 0.0
      %v1538 = vmax.f32 %v1535, 0.0
      %1539 = vrot.lane.b32.xlu0 %v1537, 127
      %v1540 = vpop.permute.xlu0 %1539
      %1541 = vrot.lane.b32.xlu0 %v1538, 127
      %v1542 = vpop.permute.xlu0 %1541
      %v1543 = vsel %vm531, %v1540, %v1542
      %v1544 = vsel %vm531, %v1542, %v1540
      %1545 = vrot.lane.b32.xlu0 %v1537, 1
      %v1546 = vpop.permute.xlu0 %1545
      %1547 = vrot.lane.b32.xlu0 %v1538, 1
      %v1548 = vpop.permute.xlu0 %1547
      %v1549 = vsel %vm538, %v1546, %v1548
      %v1550 = vsel %vm538, %v1548, %v1546
      %v1551 = vsel %vm465, %v1543, %v1550
      %v1552 = vsel %vm466, %v1544, %v1549
      %v1553 = vsel %vm483, %v1550, %v1543
      %v1554 = vsel %vm484, %v1549, %v1544
      %1555 = vrot.lane.b32.xlu0 %v1551, 112
      %v1556 = vpop.permute.xlu0 %1555
      %1557 = vrot.lane.b32.xlu0 %v1552, 112
      %v1558 = vpop.permute.xlu0 %1557
      %v1559 = vsel %vm549, %v1556, %v1558
      %v1560 = vsel %vm549, %v1558, %v1556
      %1561 = vrot.lane.b32.xlu0 %v1551, 16
      %v1562 = vpop.permute.xlu0 %1561
      %1563 = vrot.lane.b32.xlu0 %v1552, 16
      %v1564 = vpop.permute.xlu0 %1563
      %v1565 = vsel %vm556, %v1562, %v1564
      %v1566 = vsel %vm556, %v1564, %v1562
      %v1567 = vsel %vm501, %v1559, %v1566
      %v1568 = vsel %vm502, %v1560, %v1565
      %v1569 = vsel %vm519, %v1566, %v1559
      %v1570 = vsel %vm520, %v1565, %v1560
      %v1571 = vld [vmem:[%s7] sm:$0xf]
      %s1572 = scalar_lea.vmem %s7, 12
      %v1573 = vld [vmem:[%s1572] sm:$0xf]
      %v1575 = vsel %vm566, %v1573, 0
      %v1578 = vsel %vm570, %v1551, 0
      %v1581 = vsel %vm570, %v1552, 0
      %1583 = vmatprep.subr.mxu0 0.0
      %1584 = vmatpush1.msra.mxu0 0.0
      %1585 = vmatprep.subr.mxu0 0.0
      %1586 = vmatpush1.msra.mxu0 0.0
      %1587 = vmatprep.subr.mxu0 0.0
      %1588 = vmatpush1.msra.mxu0 0.0
      %1589 = vmatprep.subr.mxu0 0.0
      %1590 = vmatpush1.msra.mxu0 0.0
      %1591 = vmatprep.subr.mxu0 0.0
      %1592 = vmatpush1.msra.mxu0 0.0
      %1593 = vmatprep.subr.mxu0 0.0
      %1594 = vmatpush1.msra.mxu0 0.0
      %1595 = vmatprep.subr.mxu0 0.0
      %1596 = vmatpush1.msra.mxu0 0.0
      %1597 = vmatprep.subr.mxu0 0.0
      %1598 = vmatpush1.msra.mxu0 0.0
      %1599 = vmatprep.subr.mxu0 0.0
      %1600 = vmatpush1.msra.mxu0 0.0
      %1601 = vmatprep.subr.mxu0 0.0
      %1602 = vmatpush1.msra.mxu0 0.0
      %1603 = vmatprep.subr.mxu0 0.0
      %1604 = vmatpush1.msra.mxu0 0.0
      %1605 = vmatprep.subr.mxu0 0.0
      %1606 = vmatpush1.msra.mxu0 0.0
      %1607 = vmatprep.subr.mxu0 0.0
      %1608 = vmatpush1.msra.mxu0 0.0
      %1609 = vmatprep.subr.mxu0 0.0
      %1610 = vmatpush1.msra.mxu0 0.0
      %1611 = vmatprep.subr.mxu0 0.0
      %1612 = vmatpush1.msra.mxu0 0.0
      %1613 = vmatprep.subr.mxu0 %v1581
      %1614 = vmatpush1.msra.mxu0 %v1578
      %1615 = vmatprep.subr.mxu0 0.0
      %1616 = vmatpush2.msra.mxu0 0.0
      %1617 = vmatprep.subr.mxu0 0.0
      %1618 = vmatpush2.msra.mxu0 0.0
      %1619 = vmatprep.subr.mxu0 0.0
      %1620 = vmatpush2.msra.mxu0 0.0
      %1621 = vmatprep.subr.mxu0 0.0
      %1622 = vmatpush2.msra.mxu0 0.0
      %1623 = vmatprep.subr.mxu0 0.0
      %1624 = vmatpush2.msra.mxu0 0.0
      %1625 = vmatprep.subr.mxu0 0.0
      %1626 = vmatpush2.msra.mxu0 0.0
      %1627 = vmatprep.subr.mxu0 0.0
      %1628 = vmatpush2.msra.mxu0 0.0
      %1629 = vmatprep.subr.mxu0 0.0
      %1630 = vmatpush2.msra.mxu0 0.0
      %1631 = vmatprep.subr.mxu0 0.0
      %1632 = vmatpush2.msra.mxu0 0.0
      %1633 = vmatprep.subr.mxu0 0.0
      %1634 = vmatpush2.msra.mxu0 0.0
      %1635 = vmatprep.subr.mxu0 0.0
      %1636 = vmatpush2.msra.mxu0 0.0
      %1637 = vmatprep.subr.mxu0 0.0
      %1638 = vmatpush2.msra.mxu0 0.0
      %1639 = vmatprep.subr.mxu0 0.0
      %1640 = vmatpush2.msra.mxu0 0.0
      %1641 = vmatprep.subr.mxu0 0.0
      %1642 = vmatpush2.msra.mxu0 0.0
      %1643 = vmatprep.subr.mxu0 0.0
      %1644 = vmatpush2.msra.mxu0 0.0
      %1645 = vmatprep.subr.mxu0 0.0
      %1646 = vmatpush2.msra.mxu0 0.0
      %1647 = vmatprep.mubr.f32.mxu0 0.0
      %1648 = vmatmul.mubr.f32.gmra.mxu0 %v1575
      %v1649 = vpop.f32.mrf.mxu0
      %v1650 = vadd.f32 0.0, %v1649
      %v1651 = vpop.f32.mrf.mxu0
      %v1652 = vadd.f32 0.0, %v1651
      %1653 = vdwg.mxu0
      %v1655 = vsel %vm566, %v1571, 0
      %v1658 = vsel %vm570, %v1567, 0
      %v1661 = vsel %vm570, %v1568, 0
      %1663 = vmatprep.subr.mxu0 0.0
      %1664 = vmatpush1.msra.mxu0 0.0
      %1665 = vmatprep.subr.mxu0 0.0
      %1666 = vmatpush1.msra.mxu0 0.0
      %1667 = vmatprep.subr.mxu0 0.0
      %1668 = vmatpush1.msra.mxu0 0.0
      %1669 = vmatprep.subr.mxu0 0.0
      %1670 = vmatpush1.msra.mxu0 0.0
      %1671 = vmatprep.subr.mxu0 0.0
      %1672 = vmatpush1.msra.mxu0 0.0
      %1673 = vmatprep.subr.mxu0 0.0
      %1674 = vmatpush1.msra.mxu0 0.0
      %1675 = vmatprep.subr.mxu0 0.0
      %1676 = vmatpush1.msra.mxu0 0.0
      %1677 = vmatprep.subr.mxu0 0.0
      %1678 = vmatpush1.msra.mxu0 0.0
      %1679 = vmatprep.subr.mxu0 0.0
      %1680 = vmatpush1.msra.mxu0 0.0
      %1681 = vmatprep.subr.mxu0 0.0
      %1682 = vmatpush1.msra.mxu0 0.0
      %1683 = vmatprep.subr.mxu0 0.0
      %1684 = vmatpush1.msra.mxu0 0.0
      %1685 = vmatprep.subr.mxu0 0.0
      %1686 = vmatpush1.msra.mxu0 0.0
      %1687 = vmatprep.subr.mxu0 0.0
      %1688 = vmatpush1.msra.mxu0 0.0
      %1689 = vmatprep.subr.mxu0 0.0
      %1690 = vmatpush1.msra.mxu0 0.0
      %1691 = vmatprep.subr.mxu0 0.0
      %1692 = vmatpush1.msra.mxu0 0.0
      %1693 = vmatprep.subr.mxu0 %v1661
      %1694 = vmatpush1.msra.mxu0 %v1658
      %1695 = vmatprep.subr.mxu0 0.0
      %1696 = vmatpush2.msra.mxu0 0.0
      %1697 = vmatprep.subr.mxu0 0.0
      %1698 = vmatpush2.msra.mxu0 0.0
      %1699 = vmatprep.subr.mxu0 0.0
      %1700 = vmatpush2.msra.mxu0 0.0
      %1701 = vmatprep.subr.mxu0 0.0
      %1702 = vmatpush2.msra.mxu0 0.0
      %1703 = vmatprep.subr.mxu0 0.0
      %1704 = vmatpush2.msra.mxu0 0.0
      %1705 = vmatprep.subr.mxu0 0.0
      %1706 = vmatpush2.msra.mxu0 0.0
      %1707 = vmatprep.subr.mxu0 0.0
      %1708 = vmatpush2.msra.mxu0 0.0
      %1709 = vmatprep.subr.mxu0 0.0
      %1710 = vmatpush2.msra.mxu0 0.0
      %1711 = vmatprep.subr.mxu0 0.0
      %1712 = vmatpush2.msra.mxu0 0.0
      %1713 = vmatprep.subr.mxu0 0.0
      %1714 = vmatpush2.msra.mxu0 0.0
      %1715 = vmatprep.subr.mxu0 0.0
      %1716 = vmatpush2.msra.mxu0 0.0
      %1717 = vmatprep.subr.mxu0 0.0
      %1718 = vmatpush2.msra.mxu0 0.0
      %1719 = vmatprep.subr.mxu0 0.0
      %1720 = vmatpush2.msra.mxu0 0.0
      %1721 = vmatprep.subr.mxu0 0.0
      %1722 = vmatpush2.msra.mxu0 0.0
      %1723 = vmatprep.subr.mxu0 0.0
      %1724 = vmatpush2.msra.mxu0 0.0
      %1725 = vmatprep.subr.mxu0 0.0
      %1726 = vmatpush2.msra.mxu0 0.0
      %1727 = vmatprep.mubr.f32.mxu0 0.0
      %1728 = vmatmul.mubr.f32.gmra.mxu0 %v1655
      %v1729 = vpop.f32.mrf.mxu0
      %v1730 = vadd.f32 %v1650, %v1729
      %v1731 = vpop.f32.mrf.mxu0
      %v1732 = vadd.f32 %v1652, %v1731
      %1733 = vdwg.mxu0
      %s1734 = scalar_lea.vmem %s7, 24
      %v1735 = vld [vmem:[%s1734] sm:$0xf]
      %v1737 = vsel %vm566, %v1735, 0
      %v1740 = vsel %vm570, %v1569, 0
      %v1743 = vsel %vm570, %v1570, 0
      %1745 = vmatprep.subr.mxu0 0.0
      %1746 = vmatpush1.msra.mxu0 0.0
      %1747 = vmatprep.subr.mxu0 0.0
      %1748 = vmatpush1.msra.mxu0 0.0
      %1749 = vmatprep.subr.mxu0 0.0
      %1750 = vmatpush1.msra.mxu0 0.0
      %1751 = vmatprep.subr.mxu0 0.0
      %1752 = vmatpush1.msra.mxu0 0.0
      %1753 = vmatprep.subr.mxu0 0.0
      %1754 = vmatpush1.msra.mxu0 0.0
      %1755 = vmatprep.subr.mxu0 0.0
      %1756 = vmatpush1.msra.mxu0 0.0
      %1757 = vmatprep.subr.mxu0 0.0
      %1758 = vmatpush1.msra.mxu0 0.0
      %1759 = vmatprep.subr.mxu0 0.0
      %1760 = vmatpush1.msra.mxu0 0.0
      %1761 = vmatprep.subr.mxu0 0.0
      %1762 = vmatpush1.msra.mxu0 0.0
      %1763 = vmatprep.subr.mxu0 0.0
      %1764 = vmatpush1.msra.mxu0 0.0
      %1765 = vmatprep.subr.mxu0 0.0
      %1766 = vmatpush1.msra.mxu0 0.0
      %1767 = vmatprep.subr.mxu0 0.0
      %1768 = vmatpush1.msra.mxu0 0.0
      %1769 = vmatprep.subr.mxu0 0.0
      %1770 = vmatpush1.msra.mxu0 0.0
      %1771 = vmatprep.subr.mxu0 0.0
      %1772 = vmatpush1.msra.mxu0 0.0
      %1773 = vmatprep.subr.mxu0 0.0
      %1774 = vmatpush1.msra.mxu0 0.0
      %1775 = vmatprep.subr.mxu0 %v1743
      %1776 = vmatpush1.msra.mxu0 %v1740
      %1777 = vmatprep.subr.mxu0 0.0
      %1778 = vmatpush2.msra.mxu0 0.0
      %1779 = vmatprep.subr.mxu0 0.0
      %1780 = vmatpush2.msra.mxu0 0.0
      %1781 = vmatprep.subr.mxu0 0.0
      %1782 = vmatpush2.msra.mxu0 0.0
      %1783 = vmatprep.subr.mxu0 0.0
      %1784 = vmatpush2.msra.mxu0 0.0
      %1785 = vmatprep.subr.mxu0 0.0
      %1786 = vmatpush2.msra.mxu0 0.0
      %1787 = vmatprep.subr.mxu0 0.0
      %1788 = vmatpush2.msra.mxu0 0.0
      %1789 = vmatprep.subr.mxu0 0.0
      %1790 = vmatpush2.msra.mxu0 0.0
      %1791 = vmatprep.subr.mxu0 0.0
      %1792 = vmatpush2.msra.mxu0 0.0
      %1793 = vmatprep.subr.mxu0 0.0
      %1794 = vmatpush2.msra.mxu0 0.0
      %1795 = vmatprep.subr.mxu0 0.0
      %1796 = vmatpush2.msra.mxu0 0.0
      %1797 = vmatprep.subr.mxu0 0.0
      %1798 = vmatpush2.msra.mxu0 0.0
      %1799 = vmatprep.subr.mxu0 0.0
      %1800 = vmatpush2.msra.mxu0 0.0
      %1801 = vmatprep.subr.mxu0 0.0
      %1802 = vmatpush2.msra.mxu0 0.0
      %1803 = vmatprep.subr.mxu0 0.0
      %1804 = vmatpush2.msra.mxu0 0.0
      %1805 = vmatprep.subr.mxu0 0.0
      %1806 = vmatpush2.msra.mxu0 0.0
      %1807 = vmatprep.subr.mxu0 0.0
      %1808 = vmatpush2.msra.mxu0 0.0
      %1809 = vmatprep.mubr.f32.mxu0 0.0
      %1810 = vmatmul.mubr.f32.gmra.mxu0 %v1737
      %v1811 = vpop.f32.mrf.mxu0
      %v1812 = vadd.f32 0.0, %v1811
      %v1813 = vpop.f32.mrf.mxu0
      %v1814 = vadd.f32 0.0, %v1813
      %1815 = vdwg.mxu0
      %v1816 = vadd.f32 %v1730, %v1812
      %v1817 = vadd.f32 %v1732, %v1814
      %1818 = vrot.lane.b32.xlu0 %v1537, 112
      %v1819 = vpop.permute.xlu0 %1818
      %1820 = vrot.lane.b32.xlu0 %v1538, 112
      %v1821 = vpop.permute.xlu0 %1820
      %v1822 = vsel %vm549, %v1819, %v1821
      %v1823 = vsel %vm549, %v1821, %v1819
      %1824 = vrot.lane.b32.xlu0 %v1537, 16
      %v1825 = vpop.permute.xlu0 %1824
      %1826 = vrot.lane.b32.xlu0 %v1538, 16
      %v1827 = vpop.permute.xlu0 %1826
      %v1828 = vsel %vm556, %v1825, %v1827
      %v1829 = vsel %vm556, %v1827, %v1825
      %v1830 = vsel %vm501, %v1822, %v1829
      %v1831 = vsel %vm502, %v1823, %v1828
      %v1832 = vsel %vm519, %v1829, %v1822
      %v1833 = vsel %vm520, %v1828, %v1823
      %s1834 = scalar_lea.vmem %s7, 4
      %v1835 = vld [vmem:[%s1834] sm:$0xf]
      %v1837 = vsel %vm566, %v1835, 0
      %v1840 = vsel %vm570, %v1830, 0
      %v1843 = vsel %vm570, %v1831, 0
      %1845 = vmatprep.subr.mxu0 0.0
      %1846 = vmatpush1.msra.mxu0 0.0
      %1847 = vmatprep.subr.mxu0 0.0
      %1848 = vmatpush1.msra.mxu0 0.0
      %1849 = vmatprep.subr.mxu0 0.0
      %1850 = vmatpush1.msra.mxu0 0.0
      %1851 = vmatprep.subr.mxu0 0.0
      %1852 = vmatpush1.msra.mxu0 0.0
      %1853 = vmatprep.subr.mxu0 0.0
      %1854 = vmatpush1.msra.mxu0 0.0
      %1855 = vmatprep.subr.mxu0 0.0
      %1856 = vmatpush1.msra.mxu0 0.0
      %1857 = vmatprep.subr.mxu0 0.0
      %1858 = vmatpush1.msra.mxu0 0.0
      %1859 = vmatprep.subr.mxu0 0.0
      %1860 = vmatpush1.msra.mxu0 0.0
      %1861 = vmatprep.subr.mxu0 0.0
      %1862 = vmatpush1.msra.mxu0 0.0
      %1863 = vmatprep.subr.mxu0 0.0
      %1864 = vmatpush1.msra.mxu0 0.0
      %1865 = vmatprep.subr.mxu0 0.0
      %1866 = vmatpush1.msra.mxu0 0.0
      %1867 = vmatprep.subr.mxu0 0.0
      %1868 = vmatpush1.msra.mxu0 0.0
      %1869 = vmatprep.subr.mxu0 0.0
      %1870 = vmatpush1.msra.mxu0 0.0
      %1871 = vmatprep.subr.mxu0 0.0
      %1872 = vmatpush1.msra.mxu0 0.0
      %1873 = vmatprep.subr.mxu0 0.0
      %1874 = vmatpush1.msra.mxu0 0.0
      %1875 = vmatprep.subr.mxu0 %v1843
      %1876 = vmatpush1.msra.mxu0 %v1840
      %1877 = vmatprep.subr.mxu0 0.0
      %1878 = vmatpush2.msra.mxu0 0.0
      %1879 = vmatprep.subr.mxu0 0.0
      %1880 = vmatpush2.msra.mxu0 0.0
      %1881 = vmatprep.subr.mxu0 0.0
      %1882 = vmatpush2.msra.mxu0 0.0
      %1883 = vmatprep.subr.mxu0 0.0
      %1884 = vmatpush2.msra.mxu0 0.0
      %1885 = vmatprep.subr.mxu0 0.0
      %1886 = vmatpush2.msra.mxu0 0.0
      %1887 = vmatprep.subr.mxu0 0.0
      %1888 = vmatpush2.msra.mxu0 0.0
      %1889 = vmatprep.subr.mxu0 0.0
      %1890 = vmatpush2.msra.mxu0 0.0
      %1891 = vmatprep.subr.mxu0 0.0
      %1892 = vmatpush2.msra.mxu0 0.0
      %1893 = vmatprep.subr.mxu0 0.0
      %1894 = vmatpush2.msra.mxu0 0.0
      %1895 = vmatprep.subr.mxu0 0.0
      %1896 = vmatpush2.msra.mxu0 0.0
      %1897 = vmatprep.subr.mxu0 0.0
      %1898 = vmatpush2.msra.mxu0 0.0
      %1899 = vmatprep.subr.mxu0 0.0
      %1900 = vmatpush2.msra.mxu0 0.0
      %1901 = vmatprep.subr.mxu0 0.0
      %1902 = vmatpush2.msra.mxu0 0.0
      %1903 = vmatprep.subr.mxu0 0.0
      %1904 = vmatpush2.msra.mxu0 0.0
      %1905 = vmatprep.subr.mxu0 0.0
      %1906 = vmatpush2.msra.mxu0 0.0
      %1907 = vmatprep.subr.mxu0 0.0
      %1908 = vmatpush2.msra.mxu0 0.0
      %1909 = vmatprep.mubr.f32.mxu0 0.0
      %1910 = vmatmul.mubr.f32.gmra.mxu0 %v1837
      %v1911 = vpop.f32.mrf.mxu0
      %v1912 = vadd.f32 0.0, %v1911
      %v1913 = vpop.f32.mrf.mxu0
      %v1914 = vadd.f32 0.0, %v1913
      %1915 = vdwg.mxu0
      %v1916 = vadd.f32 %v1816, %v1912
      %v1917 = vadd.f32 %v1817, %v1914
      %s1918 = scalar_lea.vmem %s7, 16
      %v1919 = vld [vmem:[%s1918] sm:$0xf]
      %v1921 = vsel %vm566, %v1919, 0
      %v1924 = vsel %vm570, %v1537, 0
      %v1927 = vsel %vm570, %v1538, 0
      %1929 = vmatprep.subr.mxu0 0.0
      %1930 = vmatpush1.msra.mxu0 0.0
      %1931 = vmatprep.subr.mxu0 0.0
      %1932 = vmatpush1.msra.mxu0 0.0
      %1933 = vmatprep.subr.mxu0 0.0
      %1934 = vmatpush1.msra.mxu0 0.0
      %1935 = vmatprep.subr.mxu0 0.0
      %1936 = vmatpush1.msra.mxu0 0.0
      %1937 = vmatprep.subr.mxu0 0.0
      %1938 = vmatpush1.msra.mxu0 0.0
      %1939 = vmatprep.subr.mxu0 0.0
      %1940 = vmatpush1.msra.mxu0 0.0
      %1941 = vmatprep.subr.mxu0 0.0
      %1942 = vmatpush1.msra.mxu0 0.0
      %1943 = vmatprep.subr.mxu0 0.0
      %1944 = vmatpush1.msra.mxu0 0.0
      %1945 = vmatprep.subr.mxu0 0.0
      %1946 = vmatpush1.msra.mxu0 0.0
      %1947 = vmatprep.subr.mxu0 0.0
      %1948 = vmatpush1.msra.mxu0 0.0
      %1949 = vmatprep.subr.mxu0 0.0
      %1950 = vmatpush1.msra.mxu0 0.0
      %1951 = vmatprep.subr.mxu0 0.0
      %1952 = vmatpush1.msra.mxu0 0.0
      %1953 = vmatprep.subr.mxu0 0.0
      %1954 = vmatpush1.msra.mxu0 0.0
      %1955 = vmatprep.subr.mxu0 0.0
      %1956 = vmatpush1.msra.mxu0 0.0
      %1957 = vmatprep.subr.mxu0 0.0
      %1958 = vmatpush1.msra.mxu0 0.0
      %1959 = vmatprep.subr.mxu0 %v1927
      %1960 = vmatpush1.msra.mxu0 %v1924
      %1961 = vmatprep.subr.mxu0 0.0
      %1962 = vmatpush2.msra.mxu0 0.0
      %1963 = vmatprep.subr.mxu0 0.0
      %1964 = vmatpush2.msra.mxu0 0.0
      %1965 = vmatprep.subr.mxu0 0.0
      %1966 = vmatpush2.msra.mxu0 0.0
      %1967 = vmatprep.subr.mxu0 0.0
      %1968 = vmatpush2.msra.mxu0 0.0
      %1969 = vmatprep.subr.mxu0 0.0
      %1970 = vmatpush2.msra.mxu0 0.0
      %1971 = vmatprep.subr.mxu0 0.0
      %1972 = vmatpush2.msra.mxu0 0.0
      %1973 = vmatprep.subr.mxu0 0.0
      %1974 = vmatpush2.msra.mxu0 0.0
      %1975 = vmatprep.subr.mxu0 0.0
      %1976 = vmatpush2.msra.mxu0 0.0
      %1977 = vmatprep.subr.mxu0 0.0
      %1978 = vmatpush2.msra.mxu0 0.0
      %1979 = vmatprep.subr.mxu0 0.0
      %1980 = vmatpush2.msra.mxu0 0.0
      %1981 = vmatprep.subr.mxu0 0.0
      %1982 = vmatpush2.msra.mxu0 0.0
      %1983 = vmatprep.subr.mxu0 0.0
      %1984 = vmatpush2.msra.mxu0 0.0
      %1985 = vmatprep.subr.mxu0 0.0
      %1986 = vmatpush2.msra.mxu0 0.0
      %1987 = vmatprep.subr.mxu0 0.0
      %1988 = vmatpush2.msra.mxu0 0.0
      %1989 = vmatprep.subr.mxu0 0.0
      %1990 = vmatpush2.msra.mxu0 0.0
      %1991 = vmatprep.subr.mxu0 0.0
      %1992 = vmatpush2.msra.mxu0 0.0
      %1993 = vmatprep.mubr.f32.mxu0 0.0
      %1994 = vmatmul.mubr.f32.gmra.mxu0 %v1921
      %v1995 = vpop.f32.mrf.mxu0
      %v1996 = vadd.f32 0.0, %v1995
      %v1997 = vpop.f32.mrf.mxu0
      %v1998 = vadd.f32 0.0, %v1997
      %1999 = vdwg.mxu0
      %v2000 = vadd.f32 %v1916, %v1996
      %v2001 = vadd.f32 %v1917, %v1998
      %s2002 = scalar_lea.vmem %s7, 28
      %v2003 = vld [vmem:[%s2002] sm:$0xf]
      %v2005 = vsel %vm566, %v2003, 0
      %v2008 = vsel %vm570, %v1832, 0
      %v2011 = vsel %vm570, %v1833, 0
      %2013 = vmatprep.subr.mxu0 0.0
      %2014 = vmatpush1.msra.mxu0 0.0
      %2015 = vmatprep.subr.mxu0 0.0
      %2016 = vmatpush1.msra.mxu0 0.0
      %2017 = vmatprep.subr.mxu0 0.0
      %2018 = vmatpush1.msra.mxu0 0.0
      %2019 = vmatprep.subr.mxu0 0.0
      %2020 = vmatpush1.msra.mxu0 0.0
      %2021 = vmatprep.subr.mxu0 0.0
      %2022 = vmatpush1.msra.mxu0 0.0
      %2023 = vmatprep.subr.mxu0 0.0
      %2024 = vmatpush1.msra.mxu0 0.0
      %2025 = vmatprep.subr.mxu0 0.0
      %2026 = vmatpush1.msra.mxu0 0.0
      %2027 = vmatprep.subr.mxu0 0.0
      %2028 = vmatpush1.msra.mxu0 0.0
      %2029 = vmatprep.subr.mxu0 0.0
      %2030 = vmatpush1.msra.mxu0 0.0
      %2031 = vmatprep.subr.mxu0 0.0
      %2032 = vmatpush1.msra.mxu0 0.0
      %2033 = vmatprep.subr.mxu0 0.0
      %2034 = vmatpush1.msra.mxu0 0.0
      %2035 = vmatprep.subr.mxu0 0.0
      %2036 = vmatpush1.msra.mxu0 0.0
      %2037 = vmatprep.subr.mxu0 0.0
      %2038 = vmatpush1.msra.mxu0 0.0
      %2039 = vmatprep.subr.mxu0 0.0
      %2040 = vmatpush1.msra.mxu0 0.0
      %2041 = vmatprep.subr.mxu0 0.0
      %2042 = vmatpush1.msra.mxu0 0.0
      %2043 = vmatprep.subr.mxu0 %v2011
      %2044 = vmatpush1.msra.mxu0 %v2008
      %2045 = vmatprep.subr.mxu0 0.0
      %2046 = vmatpush2.msra.mxu0 0.0
      %2047 = vmatprep.subr.mxu0 0.0
      %2048 = vmatpush2.msra.mxu0 0.0
      %2049 = vmatprep.subr.mxu0 0.0
      %2050 = vmatpush2.msra.mxu0 0.0
      %2051 = vmatprep.subr.mxu0 0.0
      %2052 = vmatpush2.msra.mxu0 0.0
      %2053 = vmatprep.subr.mxu0 0.0
      %2054 = vmatpush2.msra.mxu0 0.0
      %2055 = vmatprep.subr.mxu0 0.0
      %2056 = vmatpush2.msra.mxu0 0.0
      %2057 = vmatprep.subr.mxu0 0.0
      %2058 = vmatpush2.msra.mxu0 0.0
      %2059 = vmatprep.subr.mxu0 0.0
      %2060 = vmatpush2.msra.mxu0 0.0
      %2061 = vmatprep.subr.mxu0 0.0
      %2062 = vmatpush2.msra.mxu0 0.0
      %2063 = vmatprep.subr.mxu0 0.0
      %2064 = vmatpush2.msra.mxu0 0.0
      %2065 = vmatprep.subr.mxu0 0.0
      %2066 = vmatpush2.msra.mxu0 0.0
      %2067 = vmatprep.subr.mxu0 0.0
      %2068 = vmatpush2.msra.mxu0 0.0
      %2069 = vmatprep.subr.mxu0 0.0
      %2070 = vmatpush2.msra.mxu0 0.0
      %2071 = vmatprep.subr.mxu0 0.0
      %2072 = vmatpush2.msra.mxu0 0.0
      %2073 = vmatprep.subr.mxu0 0.0
      %2074 = vmatpush2.msra.mxu0 0.0
      %2075 = vmatprep.subr.mxu0 0.0
      %2076 = vmatpush2.msra.mxu0 0.0
      %2077 = vmatprep.mubr.f32.mxu0 0.0
      %2078 = vmatmul.mubr.f32.gmra.mxu0 %v2005
      %v2079 = vpop.f32.mrf.mxu0
      %v2080 = vadd.f32 0.0, %v2079
      %v2081 = vpop.f32.mrf.mxu0
      %v2082 = vadd.f32 0.0, %v2081
      %2083 = vdwg.mxu0
      %v2084 = vadd.f32 %v2000, %v2080
      %v2085 = vadd.f32 %v2001, %v2082
      %2086 = vrot.lane.b32.xlu0 %v1553, 112
      %v2087 = vpop.permute.xlu0 %2086
      %2088 = vrot.lane.b32.xlu0 %v1554, 112
      %v2089 = vpop.permute.xlu0 %2088
      %v2090 = vsel %vm549, %v2087, %v2089
      %v2091 = vsel %vm549, %v2089, %v2087
      %2092 = vrot.lane.b32.xlu0 %v1553, 16
      %v2093 = vpop.permute.xlu0 %2092
      %2094 = vrot.lane.b32.xlu0 %v1554, 16
      %v2095 = vpop.permute.xlu0 %2094
      %v2096 = vsel %vm556, %v2093, %v2095
      %v2097 = vsel %vm556, %v2095, %v2093
      %v2098 = vsel %vm501, %v2090, %v2097
      %v2099 = vsel %vm502, %v2091, %v2096
      %v2100 = vsel %vm519, %v2097, %v2090
      %v2101 = vsel %vm520, %v2096, %v2091
      %s2102 = scalar_lea.vmem %s7, 8
      %v2103 = vld [vmem:[%s2102] sm:$0xf]
      %v2105 = vsel %vm566, %v2103, 0
      %v2108 = vsel %vm570, %v2098, 0
      %v2111 = vsel %vm570, %v2099, 0
      %2113 = vmatprep.subr.mxu0 0.0
      %2114 = vmatpush1.msra.mxu0 0.0
      %2115 = vmatprep.subr.mxu0 0.0
      %2116 = vmatpush1.msra.mxu0 0.0
      %2117 = vmatprep.subr.mxu0 0.0
      %2118 = vmatpush1.msra.mxu0 0.0
      %2119 = vmatprep.subr.mxu0 0.0
      %2120 = vmatpush1.msra.mxu0 0.0
      %2121 = vmatprep.subr.mxu0 0.0
      %2122 = vmatpush1.msra.mxu0 0.0
      %2123 = vmatprep.subr.mxu0 0.0
      %2124 = vmatpush1.msra.mxu0 0.0
      %2125 = vmatprep.subr.mxu0 0.0
      %2126 = vmatpush1.msra.mxu0 0.0
      %2127 = vmatprep.subr.mxu0 0.0
      %2128 = vmatpush1.msra.mxu0 0.0
      %2129 = vmatprep.subr.mxu0 0.0
      %2130 = vmatpush1.msra.mxu0 0.0
      %2131 = vmatprep.subr.mxu0 0.0
      %2132 = vmatpush1.msra.mxu0 0.0
      %2133 = vmatprep.subr.mxu0 0.0
      %2134 = vmatpush1.msra.mxu0 0.0
      %2135 = vmatprep.subr.mxu0 0.0
      %2136 = vmatpush1.msra.mxu0 0.0
      %2137 = vmatprep.subr.mxu0 0.0
      %2138 = vmatpush1.msra.mxu0 0.0
      %2139 = vmatprep.subr.mxu0 0.0
      %2140 = vmatpush1.msra.mxu0 0.0
      %2141 = vmatprep.subr.mxu0 0.0
      %2142 = vmatpush1.msra.mxu0 0.0
      %2143 = vmatprep.subr.mxu0 %v2111
      %2144 = vmatpush1.msra.mxu0 %v2108
      %2145 = vmatprep.subr.mxu0 0.0
      %2146 = vmatpush2.msra.mxu0 0.0
      %2147 = vmatprep.subr.mxu0 0.0
      %2148 = vmatpush2.msra.mxu0 0.0
      %2149 = vmatprep.subr.mxu0 0.0
      %2150 = vmatpush2.msra.mxu0 0.0
      %2151 = vmatprep.subr.mxu0 0.0
      %2152 = vmatpush2.msra.mxu0 0.0
      %2153 = vmatprep.subr.mxu0 0.0
      %2154 = vmatpush2.msra.mxu0 0.0
      %2155 = vmatprep.subr.mxu0 0.0
      %2156 = vmatpush2.msra.mxu0 0.0
      %2157 = vmatprep.subr.mxu0 0.0
      %2158 = vmatpush2.msra.mxu0 0.0
      %2159 = vmatprep.subr.mxu0 0.0
      %2160 = vmatpush2.msra.mxu0 0.0
      %2161 = vmatprep.subr.mxu0 0.0
      %2162 = vmatpush2.msra.mxu0 0.0
      %2163 = vmatprep.subr.mxu0 0.0
      %2164 = vmatpush2.msra.mxu0 0.0
      %2165 = vmatprep.subr.mxu0 0.0
      %2166 = vmatpush2.msra.mxu0 0.0
      %2167 = vmatprep.subr.mxu0 0.0
      %2168 = vmatpush2.msra.mxu0 0.0
      %2169 = vmatprep.subr.mxu0 0.0
      %2170 = vmatpush2.msra.mxu0 0.0
      %2171 = vmatprep.subr.mxu0 0.0
      %2172 = vmatpush2.msra.mxu0 0.0
      %2173 = vmatprep.subr.mxu0 0.0
      %2174 = vmatpush2.msra.mxu0 0.0
      %2175 = vmatprep.subr.mxu0 0.0
      %2176 = vmatpush2.msra.mxu0 0.0
      %2177 = vmatprep.mubr.f32.mxu0 0.0
      %2178 = vmatmul.mubr.f32.gmra.mxu0 %v2105
      %v2179 = vpop.f32.mrf.mxu0
      %v2180 = vadd.f32 0.0, %v2179
      %v2181 = vpop.f32.mrf.mxu0
      %v2182 = vadd.f32 0.0, %v2181
      %2183 = vdwg.mxu0
      %v2184 = vadd.f32 %v2084, %v2180
      %v2185 = vadd.f32 %v2085, %v2182
      %s2186 = scalar_lea.vmem %s7, 20
      %v2187 = vld [vmem:[%s2186] sm:$0xf]
      %v2189 = vsel %vm566, %v2187, 0
      %v2192 = vsel %vm570, %v1553, 0
      %v2195 = vsel %vm570, %v1554, 0
      %2197 = vmatprep.subr.mxu0 0.0
      %2198 = vmatpush1.msra.mxu0 0.0
      %2199 = vmatprep.subr.mxu0 0.0
      %2200 = vmatpush1.msra.mxu0 0.0
      %2201 = vmatprep.subr.mxu0 0.0
      %2202 = vmatpush1.msra.mxu0 0.0
      %2203 = vmatprep.subr.mxu0 0.0
      %2204 = vmatpush1.msra.mxu0 0.0
      %2205 = vmatprep.subr.mxu0 0.0
      %2206 = vmatpush1.msra.mxu0 0.0
      %2207 = vmatprep.subr.mxu0 0.0
      %2208 = vmatpush1.msra.mxu0 0.0
      %2209 = vmatprep.subr.mxu0 0.0
      %2210 = vmatpush1.msra.mxu0 0.0
      %2211 = vmatprep.subr.mxu0 0.0
      %2212 = vmatpush1.msra.mxu0 0.0
      %2213 = vmatprep.subr.mxu0 0.0
      %2214 = vmatpush1.msra.mxu0 0.0
      %2215 = vmatprep.subr.mxu0 0.0
      %2216 = vmatpush1.msra.mxu0 0.0
      %2217 = vmatprep.subr.mxu0 0.0
      %2218 = vmatpush1.msra.mxu0 0.0
      %2219 = vmatprep.subr.mxu0 0.0
      %2220 = vmatpush1.msra.mxu0 0.0
      %2221 = vmatprep.subr.mxu0 0.0
      %2222 = vmatpush1.msra.mxu0 0.0
      %2223 = vmatprep.subr.mxu0 0.0
      %2224 = vmatpush1.msra.mxu0 0.0
      %2225 = vmatprep.subr.mxu0 0.0
      %2226 = vmatpush1.msra.mxu0 0.0
      %2227 = vmatprep.subr.mxu0 %v2195
      %2228 = vmatpush1.msra.mxu0 %v2192
      %2229 = vmatprep.subr.mxu0 0.0
      %2230 = vmatpush2.msra.mxu0 0.0
      %2231 = vmatprep.subr.mxu0 0.0
      %2232 = vmatpush2.msra.mxu0 0.0
      %2233 = vmatprep.subr.mxu0 0.0
      %2234 = vmatpush2.msra.mxu0 0.0
      %2235 = vmatprep.subr.mxu0 0.0
      %2236 = vmatpush2.msra.mxu0 0.0
      %2237 = vmatprep.subr.mxu0 0.0
      %2238 = vmatpush2.msra.mxu0 0.0
      %2239 = vmatprep.subr.mxu0 0.0
      %2240 = vmatpush2.msra.mxu0 0.0
      %2241 = vmatprep.subr.mxu0 0.0
      %2242 = vmatpush2.msra.mxu0 0.0
      %2243 = vmatprep.subr.mxu0 0.0
      %2244 = vmatpush2.msra.mxu0 0.0
      %2245 = vmatprep.subr.mxu0 0.0
      %2246 = vmatpush2.msra.mxu0 0.0
      %2247 = vmatprep.subr.mxu0 0.0
      %2248 = vmatpush2.msra.mxu0 0.0
      %2249 = vmatprep.subr.mxu0 0.0
      %2250 = vmatpush2.msra.mxu0 0.0
      %2251 = vmatprep.subr.mxu0 0.0
      %2252 = vmatpush2.msra.mxu0 0.0
      %2253 = vmatprep.subr.mxu0 0.0
      %2254 = vmatpush2.msra.mxu0 0.0
      %2255 = vmatprep.subr.mxu0 0.0
      %2256 = vmatpush2.msra.mxu0 0.0
      %2257 = vmatprep.subr.mxu0 0.0
      %2258 = vmatpush2.msra.mxu0 0.0
      %2259 = vmatprep.subr.mxu0 0.0
      %2260 = vmatpush2.msra.mxu0 0.0
      %2261 = vmatprep.mubr.f32.mxu0 0.0
      %2262 = vmatmul.mubr.f32.gmra.mxu0 %v2189
      %v2263 = vpop.f32.mrf.mxu0
      %v2264 = vadd.f32 0.0, %v2263
      %v2265 = vpop.f32.mrf.mxu0
      %v2266 = vadd.f32 0.0, %v2265
      %2267 = vdwg.mxu0
      %v2268 = vadd.f32 %v2184, %v2264
      %v2269 = vadd.f32 %v2185, %v2266
      %s2270 = scalar_lea.vmem %s7, 32
      %v2271 = vld [vmem:[%s2270] sm:$0xf]
      %v2273 = vsel %vm566, %v2271, 0
      %v2276 = vsel %vm570, %v2100, 0
      %v2279 = vsel %vm570, %v2101, 0
      %2281 = vmatprep.subr.mxu0 0.0
      %2282 = vmatpush1.msra.mxu0 0.0
      %2283 = vmatprep.subr.mxu0 0.0
      %2284 = vmatpush1.msra.mxu0 0.0
      %2285 = vmatprep.subr.mxu0 0.0
      %2286 = vmatpush1.msra.mxu0 0.0
      %2287 = vmatprep.subr.mxu0 0.0
      %2288 = vmatpush1.msra.mxu0 0.0
      %2289 = vmatprep.subr.mxu0 0.0
      %2290 = vmatpush1.msra.mxu0 0.0
      %2291 = vmatprep.subr.mxu0 0.0
      %2292 = vmatpush1.msra.mxu0 0.0
      %2293 = vmatprep.subr.mxu0 0.0
      %2294 = vmatpush1.msra.mxu0 0.0
      %2295 = vmatprep.subr.mxu0 0.0
      %2296 = vmatpush1.msra.mxu0 0.0
      %2297 = vmatprep.subr.mxu0 0.0
      %2298 = vmatpush1.msra.mxu0 0.0
      %2299 = vmatprep.subr.mxu0 0.0
      %2300 = vmatpush1.msra.mxu0 0.0
      %2301 = vmatprep.subr.mxu0 0.0
      %2302 = vmatpush1.msra.mxu0 0.0
      %2303 = vmatprep.subr.mxu0 0.0
      %2304 = vmatpush1.msra.mxu0 0.0
      %2305 = vmatprep.subr.mxu0 0.0
      %2306 = vmatpush1.msra.mxu0 0.0
      %2307 = vmatprep.subr.mxu0 0.0
      %2308 = vmatpush1.msra.mxu0 0.0
      %2309 = vmatprep.subr.mxu0 0.0
      %2310 = vmatpush1.msra.mxu0 0.0
      %2311 = vmatprep.subr.mxu0 %v2279
      %2312 = vmatpush1.msra.mxu0 %v2276
      %2313 = vmatprep.subr.mxu0 0.0
      %2314 = vmatpush2.msra.mxu0 0.0
      %2315 = vmatprep.subr.mxu0 0.0
      %2316 = vmatpush2.msra.mxu0 0.0
      %2317 = vmatprep.subr.mxu0 0.0
      %2318 = vmatpush2.msra.mxu0 0.0
      %2319 = vmatprep.subr.mxu0 0.0
      %2320 = vmatpush2.msra.mxu0 0.0
      %2321 = vmatprep.subr.mxu0 0.0
      %2322 = vmatpush2.msra.mxu0 0.0
      %2323 = vmatprep.subr.mxu0 0.0
      %2324 = vmatpush2.msra.mxu0 0.0
      %2325 = vmatprep.subr.mxu0 0.0
      %2326 = vmatpush2.msra.mxu0 0.0
      %2327 = vmatprep.subr.mxu0 0.0
      %2328 = vmatpush2.msra.mxu0 0.0
      %2329 = vmatprep.subr.mxu0 0.0
      %2330 = vmatpush2.msra.mxu0 0.0
      %2331 = vmatprep.subr.mxu0 0.0
      %2332 = vmatpush2.msra.mxu0 0.0
      %2333 = vmatprep.subr.mxu0 0.0
      %2334 = vmatpush2.msra.mxu0 0.0
      %2335 = vmatprep.subr.mxu0 0.0
      %2336 = vmatpush2.msra.mxu0 0.0
      %2337 = vmatprep.subr.mxu0 0.0
      %2338 = vmatpush2.msra.mxu0 0.0
      %2339 = vmatprep.subr.mxu0 0.0
      %2340 = vmatpush2.msra.mxu0 0.0
      %2341 = vmatprep.subr.mxu0 0.0
      %2342 = vmatpush2.msra.mxu0 0.0
      %2343 = vmatprep.subr.mxu0 0.0
      %2344 = vmatpush2.msra.mxu0 0.0
      %2345 = vmatprep.mubr.f32.mxu0 0.0
      %2346 = vmatmul.mubr.f32.gmra.mxu0 %v2273
      %v2347 = vpop.f32.mrf.mxu0
      %v2348 = vadd.f32 0.0, %v2347
      %v2349 = vpop.f32.mrf.mxu0
      %v2350 = vadd.f32 0.0, %v2349
      %2351 = vdwg.mxu0
      %v2352 = vadd.f32 %v2268, %v2348
      %v2353 = vadd.f32 %v2269, %v2350
      %v2354 = vsel %vm570, %v2352, 0.0
      %v2355 = vsel %vm570, %v2353, 0.0
      %v2356 = vadd.f32 %v2354, %v2355
      %2357 = vadd.xlane.f32.xlu0 %v2356
      %v2358 = vpop.xlane.xlu0 %2357
      %v2359 = vmul.f32 %v2358, 0.00390625
      %v2360 = vsub.f32 %v2352, %v2359
      %v2361 = vsub.f32 %v2353, %v2359
      %v2362 = vmul.f32 %v2360, %v2360
      %v2363 = vmul.f32 %v2361, %v2361
      %v2364 = vsel %vm570, %v2362, 0.0
      %v2365 = vsel %vm570, %v2363, 0.0
      %v2366 = vadd.f32 %v2364, %v2365
      %2367 = vadd.xlane.f32.xlu0 %v2366
      %v2368 = vpop.xlane.xlu0 %2367
      %v2369 = vmul.f32 %v2368, 0.00390625
      %v2370 = vadd.f32 %v2369, 1e-05
      %v2371 = vrsqrt.pop %v2370
      %v2372 = vmul.f32 %v2360, %v2371
      %v2373 = vmul.f32 %v2361, %v2371
      %v2374 = vld [vmem:[%s9] sm:$0xff]
      %v2375 = vld [vmem:[%s442] sm:$0xff]
      %2377 = vset.pattern.permute.xlu0 0
      %2378 = vperm.xlu0 %2377, %v2375
      %v2379 = vpop.permute.xlu0 %2378
      %v2382 = vsel %vm566, %v2374, 0
      %v2385 = vsel %vm570, %v2372, 0
      %v2388 = vsel %vm570, %v2373, 0
      %2390 = vmatprep.subr.mxu0 0.0
      %2391 = vmatpush1.msra.mxu0 0.0
      %2392 = vmatprep.subr.mxu0 0.0
      %2393 = vmatpush1.msra.mxu0 0.0
      %2394 = vmatprep.subr.mxu0 0.0
      %2395 = vmatpush1.msra.mxu0 0.0
      %2396 = vmatprep.subr.mxu0 0.0
      %2397 = vmatpush1.msra.mxu0 0.0
      %2398 = vmatprep.subr.mxu0 0.0
      %2399 = vmatpush1.msra.mxu0 0.0
      %2400 = vmatprep.subr.mxu0 0.0
      %2401 = vmatpush1.msra.mxu0 0.0
      %2402 = vmatprep.subr.mxu0 0.0
      %2403 = vmatpush1.msra.mxu0 0.0
      %2404 = vmatprep.subr.mxu0 0.0
      %2405 = vmatpush1.msra.mxu0 0.0
      %2406 = vmatprep.subr.mxu0 0.0
      %2407 = vmatpush1.msra.mxu0 0.0
      %2408 = vmatprep.subr.mxu0 0.0
      %2409 = vmatpush1.msra.mxu0 0.0
      %2410 = vmatprep.subr.mxu0 0.0
      %2411 = vmatpush1.msra.mxu0 0.0
      %2412 = vmatprep.subr.mxu0 0.0
      %2413 = vmatpush1.msra.mxu0 0.0
      %2414 = vmatprep.subr.mxu0 0.0
      %2415 = vmatpush1.msra.mxu0 0.0
      %2416 = vmatprep.subr.mxu0 0.0
      %2417 = vmatpush1.msra.mxu0 0.0
      %2418 = vmatprep.subr.mxu0 0.0
      %2419 = vmatpush1.msra.mxu0 0.0
      %2420 = vmatprep.subr.mxu0 %v2388
      %2421 = vmatpush1.msra.mxu0 %v2385
      %2422 = vmatprep.subr.mxu0 0.0
      %2423 = vmatpush2.msra.mxu0 0.0
      %2424 = vmatprep.subr.mxu0 0.0
      %2425 = vmatpush2.msra.mxu0 0.0
      %2426 = vmatprep.subr.mxu0 0.0
      %2427 = vmatpush2.msra.mxu0 0.0
      %2428 = vmatprep.subr.mxu0 0.0
      %2429 = vmatpush2.msra.mxu0 0.0
      %2430 = vmatprep.subr.mxu0 0.0
      %2431 = vmatpush2.msra.mxu0 0.0
      %2432 = vmatprep.subr.mxu0 0.0
      %2433 = vmatpush2.msra.mxu0 0.0
      %2434 = vmatprep.subr.mxu0 0.0
      %2435 = vmatpush2.msra.mxu0 0.0
      %2436 = vmatprep.subr.mxu0 0.0
      %2437 = vmatpush2.msra.mxu0 0.0
      %2438 = vmatprep.subr.mxu0 0.0
      %2439 = vmatpush2.msra.mxu0 0.0
      %2440 = vmatprep.subr.mxu0 0.0
      %2441 = vmatpush2.msra.mxu0 0.0
      %2442 = vmatprep.subr.mxu0 0.0
      %2443 = vmatpush2.msra.mxu0 0.0
      %2444 = vmatprep.subr.mxu0 0.0
      %2445 = vmatpush2.msra.mxu0 0.0
      %2446 = vmatprep.subr.mxu0 0.0
      %2447 = vmatpush2.msra.mxu0 0.0
      %2448 = vmatprep.subr.mxu0 0.0
      %2449 = vmatpush2.msra.mxu0 0.0
      %2450 = vmatprep.subr.mxu0 0.0
      %2451 = vmatpush2.msra.mxu0 0.0
      %2452 = vmatprep.subr.mxu0 0.0
      %2453 = vmatpush2.msra.mxu0 0.0
      %2454 = vmatprep.mubr.f32.mxu0 0.0
      %2455 = vmatmul.mubr.f32.gmra.mxu0 %v2382
      %v2456 = vpop.f32.mrf.mxu0
      %v2457 = vadd.f32 %v2379, %v2456
      %v2458 = vpop.f32.mrf.mxu0
      %v2459 = vadd.f32 %v2379, %v2458
      %2460 = vdwg.mxu0
      %v2461 = vmax.f32 %v2457, 0.0
      %v2462 = vmax.f32 %v2459, 0.0
      %v2463 = vld [vmem:[%s10] sm:$0xf]
      %v2464 = vld [vmem:[%s11] sm:$0xf]
      %2466 = vset.pattern.permute.xlu0 0
      %2467 = vperm.xlu0 %2466, %v2464
      %v2468 = vpop.permute.xlu0 %2467
      %v2471 = vsel %vm1462, %v2463, 0
      %2473 = vmatprep.subr.mxu0 0.0
      %2474 = vmatpush1.msra.mxu0 0.0
      %2475 = vmatprep.subr.mxu0 0.0
      %2476 = vmatpush1.msra.mxu0 0.0
      %2477 = vmatprep.subr.mxu0 0.0
      %2478 = vmatpush1.msra.mxu0 0.0
      %2479 = vmatprep.subr.mxu0 0.0
      %2480 = vmatpush1.msra.mxu0 0.0
      %2481 = vmatprep.subr.mxu0 0.0
      %2482 = vmatpush1.msra.mxu0 0.0
      %2483 = vmatprep.subr.mxu0 0.0
      %2484 = vmatpush1.msra.mxu0 0.0
      %2485 = vmatprep.subr.mxu0 0.0
      %2486 = vmatpush1.msra.mxu0 0.0
      %2487 = vmatprep.subr.mxu0 0.0
      %2488 = vmatpush1.msra.mxu0 0.0
      %2489 = vmatprep.subr.mxu0 0.0
      %2490 = vmatpush1.msra.mxu0 0.0
      %2491 = vmatprep.subr.mxu0 0.0
      %2492 = vmatpush1.msra.mxu0 0.0
      %2493 = vmatprep.subr.mxu0 0.0
      %2494 = vmatpush1.msra.mxu0 0.0
      %2495 = vmatprep.subr.mxu0 0.0
      %2496 = vmatpush1.msra.mxu0 0.0
      %2497 = vmatprep.subr.mxu0 0.0
      %2498 = vmatpush1.msra.mxu0 0.0
      %2499 = vmatprep.subr.mxu0 0.0
      %2500 = vmatpush1.msra.mxu0 0.0
      %2501 = vmatprep.subr.mxu0 0.0
      %2502 = vmatpush1.msra.mxu0 0.0
      %2503 = vmatprep.subr.mxu0 %v2462
      %2504 = vmatpush1.msra.mxu0 %v2461
      %2505 = vmatprep.subr.mxu0 0.0
      %2506 = vmatpush2.msra.mxu0 0.0
      %2507 = vmatprep.subr.mxu0 0.0
      %2508 = vmatpush2.msra.mxu0 0.0
      %2509 = vmatprep.subr.mxu0 0.0
      %2510 = vmatpush2.msra.mxu0 0.0
      %2511 = vmatprep.subr.mxu0 0.0
      %2512 = vmatpush2.msra.mxu0 0.0
      %2513 = vmatprep.subr.mxu0 0.0
      %2514 = vmatpush2.msra.mxu0 0.0
      %2515 = vmatprep.subr.mxu0 0.0
      %2516 = vmatpush2.msra.mxu0 0.0
      %2517 = vmatprep.subr.mxu0 0.0
      %2518 = vmatpush2.msra.mxu0 0.0
      %2519 = vmatprep.subr.mxu0 0.0
      %2520 = vmatpush2.msra.mxu0 0.0
      %2521 = vmatprep.subr.mxu0 0.0
      %2522 = vmatpush2.msra.mxu0 0.0
      %2523 = vmatprep.subr.mxu0 0.0
      %2524 = vmatpush2.msra.mxu0 0.0
      %2525 = vmatprep.subr.mxu0 0.0
      %2526 = vmatpush2.msra.mxu0 0.0
      %2527 = vmatprep.subr.mxu0 0.0
      %2528 = vmatpush2.msra.mxu0 0.0
      %2529 = vmatprep.subr.mxu0 0.0
      %2530 = vmatpush2.msra.mxu0 0.0
      %2531 = vmatprep.subr.mxu0 0.0
      %2532 = vmatpush2.msra.mxu0 0.0
      %2533 = vmatprep.subr.mxu0 0.0
      %2534 = vmatpush2.msra.mxu0 0.0
      %2535 = vmatprep.subr.mxu0 0.0
      %2536 = vmatpush2.msra.mxu0 0.0
      %2537 = vmatprep.mubr.f32.mxu0 0.0
      %2538 = vmatmul.mubr.f32.gmra.mxu0 %v2471
      %v2539 = vpop.f32.mrf.mxu0
      %v2540 = vadd.f32 %v2468, %v2539
      %v2541 = vpop.f32.mrf.mxu0
      %v2542 = vadd.f32 %v2468, %v2541
      %2543 = vdwg.mxu0
      %v2544 = vmax.f32 %v2540, 0.0
      %v2545 = vmax.f32 %v2542, 0.0
      %v2546 = vadd.f32 %v2544, %v521
      %v2547 = vadd.f32 %v2545, %v523
      %v2550 = vcombine.low %v2546, %v2547
      %2552 = vst [vmem:[%s447] sm:$0xff] %v2550
      %p2553 = scmp.lt.s32.totalorder %s23, 1
      %s2554 = scalar_select %p2553, %s23, 1
      %s2555 = smul.addr %s2554, 2
      %s2556 = smul.addr %s2555, 4
      %s2557 = scalar_lea.vmem %s12, %s2556
      // Predicated region
      $region69: #{mis_in_res_blk.1} parent=67 // pred_check
        %p2558 = pneg %p308
      $region70: #{mis_in_res_blk.1} parent=67 // pred_check_branch
        %2560 = sbr.rel (%p2558) target = $region72
      $region71: #{mis_in_res_blk.1} parent=67 // pred_region
        _
      $region72: #{mis_in_res_blk.1} parent=67 // pred_fallthru
        _
    $region68: #{mis_in_res_blk.1} parent=5 // pred_fallthru
      _
    %p2561 = scmp.le.s32.totalorder 2, %s18
    // Predicated region
    $region73: #{mis_in_res_blk.1} parent=5 // pred_check
      %p2562 = pneg %p2561
    $region74: #{mis_in_res_blk.1} parent=5 // pred_check_branch
      %2564 = sbr.rel (%p2562) target = $region76
    $region75: #{mis_in_res_blk.1} parent=5 // pred_region
      %s2565 = ssub.s32 %s18, 2
      // Predicated region
      $region77: #{mis_in_res_blk.1} parent=75 // pred_check
        %p2566 = pneg %p314
      $region78: #{mis_in_res_blk.1} parent=75 // pred_check_branch
        %2568 = sbr.rel (%p2566) target = $region80
      $region79: #{mis_in_res_blk.1} parent=75 // pred_region
        %p2569 = scmp.lt.s32.totalorder %s24, 1
        %s2570 = scalar_select %p2569, %s24, 1
        %s2571 = smul.addr %s2570, 2
        %s2572 = smul.addr %s2571, 4
        %s2573 = scalar_lea.vmem %s12, %s2572
      $region80: #{mis_in_res_blk.1} parent=75 // pred_fallthru
        _
    $region76: #{mis_in_res_blk.1} parent=5 // pred_fallthru
      _
  $region6: #{mis_in_res_blk.1} parent=0 // loop_footer
    %s22 = sadd.s32 1, %s18
  $region7: #{mis_in_res_blk.1} parent=0 // loop_footer_branch
    %17 = sbr.rel target = $region3
  $region8: #{mis_in_res_blk.1} parent=0 // loop_exit
    _

</llo_original>
